<compile_context>
chip_gen: v7x
topology: tpu7x:2x2x1
jax: 0.10.0
libtpu: 0.0.40
codegen_flags: <defaults>
</compile_context>

<pallas_src>
import functools

import jax
import jax.numpy as jnp
from jax import lax
from jax.experimental import pallas as pl
from jax.experimental.pallas import tpu as pltpu

EXPANSION = 4
BN_EPS = 1e-5


def _ds(start, size, step):
    """Dynamic slice helper; plain pl.ds on the (tested) stride-1 path,
    strided pl.ds reads for stride > 1 (avoids value-level strided relayouts)."""
    if step == 1:
        return pl.ds(start, size)
    return pl.ds(start, size, stride=step)


# ----------------------------------------------------------------------------
# Fused kernel: one (batch, row-tile) program does the whole bottleneck block.
# ----------------------------------------------------------------------------
def _bottleneck_fused_kernel(*refs, stride, tile_h, has_proj, emit_preact):
    i = 0
    x_ref = refs[i]; i += 1            # (1, H, W, Cin)    compute dtype
    w1_ref = refs[i]; i += 1           # (Cin, P)          BN scale folded in
    b1_ref = refs[i]; i += 1           # (1, P)            f32
    w2_ref = refs[i]; i += 1           # (3, 3, P, P)      HWIO, BN folded
    b2_ref = refs[i]; i += 1           # (1, P)            f32
    w3_ref = refs[i]; i += 1           # (P, Cout)         BN folded
    b3_ref = refs[i]; i += 1           # (1, Cout)         f32
    if has_proj:
        wsc_ref = refs[i]; i += 1      # (Cin, Cout)       BN folded
        bsc_ref = refs[i]; i += 1      # (1, Cout)         f32
    out_ref = refs[i]; i += 1          # (1, TH, Wout, Cout)
    if emit_preact:
        pre_ref = refs[i]; i += 1      # (1, TH, Wout, Cout)
    upad_ref = refs[i]; i += 1         # (TH_IN, W+2, P)   VMEM scratch

    _, H, W, Cin = x_ref.shape
    P = w1_ref.shape[1]
    Cout = w3_ref.shape[1]
    s = stride
    TH = tile_h
    Wout = (W - 1) // s + 1
    n_mid = (TH - 1) * s + 1           # x rows of this tile that are always in range
    TH_IN = n_mid + 2                  # + 1-row halo on each side
    f32 = jnp.float32
    cdt = upad_ref.dtype               # MXU compute dtype (bf16 by default)

    t = pl.program_id(1)
    r0 = t * (TH * s)                  # first "owned" input row of this tile

    w1 = w1_ref[...]
    b1 = b1_ref[...]

    def conv1(rows):                   # (R, W, Cin) -> (R, W, P)
        R = rows.shape[0]
        acc = jnp.dot(rows.reshape(R * W, Cin), w1,
                      preferred_element_type=f32) + b1
        return jnp.maximum(acc, 0.0).reshape(R, W, P).astype(cdt)

    # --- stage 1: conv1 + BN + ReLU into a zero-padded VMEM tile ------------
    # Zeroing the whole padded tile provides the 3x3 "padding=1" zeros for the
    # image border (top/bottom halo rows and the left/right columns).
    upad_ref[...] = jnp.zeros(upad_ref.shape, cdt)
    upad_ref[1:1 + n_mid, 1:W + 1, :] = conv1(x_ref[0, pl.ds(r0, n_mid), :, :])

    @pl.when(r0 > 0)                                     # top halo row
    def _():
        upad_ref[0:1, 1:W + 1, :] = conv1(x_ref[0, pl.ds(r0 - 1, 1), :, :])

    rb = r0 + n_mid                                      # bottom halo row
    @pl.when(rb < H)
    def _():
        upad_ref[TH_IN - 1:TH_IN, 1:W + 1, :] = conv1(
            x_ref[0, pl.ds(rb, 1), :, :])

    # --- stage 2: 3x3 conv as 9 shifted matmuls, f32 accumulation -----------
    acc = jnp.zeros((TH * Wout, P), f32)
    for kh in range(3):
        for kw in range(3):
            patch = upad_ref[_ds(kh, TH, s), _ds(kw, Wout, s), :]
            acc = acc + jnp.dot(patch.reshape(TH * Wout, P),
                                w2_ref[kh, kw, :, :],
                                preferred_element_type=f32)
    u2 = jnp.maximum(acc + b2_ref[...], 0.0).astype(cdt)         # (TH*Wout, P)

    # --- stage 3: conv3 + BN, shortcut, residual add, ReLU ------------------
    y = jnp.dot(u2, w3_ref[...], preferred_element_type=f32) + b3_ref[...]

    if has_proj:
        # stride-s spatial subsample of x done at load time (no HBM gather).
        xs = x_ref[0, _ds(r0, TH, s), _ds(0, Wout, s), :]        # (TH, Wout, Cin)
        sc = jnp.dot(xs.reshape(TH * Wout, Cin), wsc_ref[...],
                     preferred_element_type=f32) + bsc_ref[...]
    else:
        # identity shortcut: module guarantees stride == 1 and Cin == Cout.
        sc = x_ref[0, pl.ds(r0, TH), :, :].reshape(TH * Wout, Cout).astype(f32)

    pre = y + sc
    out = jnp.maximum(pre, 0.0)
    out_ref[...] = out.reshape(1, TH, Wout, Cout).astype(out_ref.dtype)
    if emit_preact:
        pre_ref[...] = pre.reshape(1, TH, Wout, Cout).astype(pre_ref.dtype)


# ----------------------------------------------------------------------------
# Wrapper
# ----------------------------------------------------------------------------
def _pick_tile_h(Hout, requested, H, W, Cin, P, Cout, stride, act_itemsize,
                 n_outputs, budget_bytes=20 * 1024 * 1024):
    """Largest tile height (divisor of Hout) whose working set fits the budget
    (kept well under the explicit 32 MiB scoped-VMEM limit => v7x-safe)."""
    if requested is not None:
        cap = max(1, min(int(requested), Hout))
        return max(d for d in range(1, cap + 1) if Hout % d == 0)
    Wout = (W - 1) // stride + 1
    best = 1
    for th in range(1, Hout + 1):
        if Hout % th != 0:
            continue
        th_in = (th - 1) * stride + 3
        tile_bytes = (2 * H * W * Cin * act_itemsize          # x block, dbl-buffered
                      + th_in * (W + 2) * P * act_itemsize    # u_pad scratch
                      + 2 * n_outputs * th * Wout * Cout * 4) # f32 output block(s)
        if tile_bytes <= budget_bytes:
            best = th
    return best


def bottleneck_forward(x_nchw, params, *, stride=1, is_last=False,
                       tile_h=None, compute_dtype=jnp.bfloat16):
    x = jnp.transpose(x_nchw, (0, 2, 3, 1))                   # NCHW -> NHWC
    N, H, W, Cin = x.shape
    P = params["w1"].shape[1]
    Cout = EXPANSION * P
    s = int(stride)
    Hout = (H - 1) // s + 1
    Wout = (W - 1) // s + 1
    has_proj = params["w_sc"] is not None
    if not has_proj:
        assert s == 1 and Cin == Cout, "identity shortcut needs stride=1, Cin==4*planes"

    cd = compute_dtype
    f32 = jnp.float32

    # Fold the BN scale into the conv weights (bias stays, added in-kernel).
    w1 = (params["w1"] * params["s1"]).astype(cd)
    w2 = (params["w2"] * params["s2"].reshape(1, 1, 1, -1)).astype(cd)
    w3 = (params["w3"] * params["s3"]).astype(cd)
    b1 = params["b1"].astype(f32)
    b2 = params["b2"].astype(f32)
    b3 = params["b3"].astype(f32)
    xc = x.astype(cd)

    inputs = [xc, w1, b1, w2, b2, w3, b3]
    if has_proj:
        inputs += [(params["w_sc"] * params["s_sc"]).astype(cd),
                   params["b_sc"].astype(f32)]

    act_itemsize = jnp.dtype(cd).itemsize
    n_outputs = 2 if is_last else 1
    TH = _pick_tile_h(Hout, tile_h, H, W, Cin, P, Cout, s, act_itemsize, n_outputs)
    n_tiles = Hout // TH
    TH_IN = (TH - 1) * s + 3

    def _full_spec(shape):
        zeros = (0,) * len(shape)
        return pl.BlockSpec(shape, lambda n, t: zeros)

    in_specs = [pl.BlockSpec((1, H, W, Cin), lambda n, t: (n, 0, 0, 0))]
    in_specs += [_full_spec(a.shape) for a in inputs[1:]]

    out_dt = x_nchw.dtype
    out_shape = [jax.ShapeDtypeStruct((N, Hout, Wout, Cout), out_dt)]
    out_specs = [pl.BlockSpec((1, TH, Wout, Cout), lambda n, t: (n, t, 0, 0))]
    if is_last:
        out_shape.append(jax.ShapeDtypeStruct((N, Hout, Wout, Cout), out_dt))
        out_specs.append(pl.BlockSpec((1, TH, Wout, Cout), lambda n, t: (n, t, 0, 0)))

    flops = 2 * N * (H * W * Cin * P
                     + Hout * Wout * 9 * P * P
                     + Hout * Wout * P * Cout
                     + (Hout * Wout * Cin * Cout if has_proj else 0))
    bytes_accessed = (xc.size * act_itemsize
                      + sum(a.size * a.dtype.itemsize for a in inputs[1:])
                      + n_outputs * N * Hout * Wout * Cout * jnp.dtype(out_dt).itemsize)

    kernel = functools.partial(_bottleneck_fused_kernel, stride=s, tile_h=TH,
                               has_proj=has_proj, emit_preact=is_last)

    res = pl.pallas_call(
        kernel,
        out_shape=tuple(out_shape),
        grid=(N, n_tiles),
        in_specs=in_specs,
        out_specs=tuple(out_specs),
        scratch_shapes=[pltpu.VMEM((TH_IN, W + 2, P), cd)],
        compiler_params=pltpu.CompilerParams(
            dimension_semantics=("parallel", "parallel"),
            vmem_limit_bytes=32 * 1024 * 1024),
        cost_estimate=pl.CostEstimate(flops=int(flops), transcendentals=0,
                                      bytes_accessed=int(bytes_accessed)),
    )(*inputs)

    out = jnp.transpose(res[0], (0, 3, 1, 2))                 # NHWC -> NCHW
    if is_last:
        preact = jnp.transpose(res[1], (0, 3, 1, 2))
        return out, preact
    return out


# ----------------------------------------------------------------------------
# Parameters (inference-mode BN folded to per-channel scale / bias)
# ----------------------------------------------------------------------------
def _fold_bn(gamma, beta, mean, var, eps=BN_EPS):
    scale = gamma / jnp.sqrt(var + eps)
    bias = beta - mean * scale
    return scale.reshape(1, -1), bias.reshape(1, -1)


def init_bottleneck_params(key, in_planes, planes, stride):
    out_planes = EXPANSION * planes
    ks = jax.random.split(key, 8)

    def bn_params(k, c):
        k1, k2, k3 = jax.random.split(k, 3)
        gamma = 1.0 + 0.1 * jax.random.normal(k1, (c,), jnp.float32)
        beta = 0.1 * jax.random.normal(k2, (c,), jnp.float32)
        mean = 0.1 * jax.random.normal(k3, (c,), jnp.float32)
        var = jnp.ones((c,), jnp.float32)
        return _fold_bn(gamma, beta, mean, var)

    p = {}
    p["w1"] = 0.1 * jax.random.normal(ks[0], (in_planes, planes), jnp.float32)
    p["s1"], p["b1"] = bn_params(ks[1], planes)
    p["w2"] = 0.1 * jax.random.normal(ks[2], (3, 3, planes, planes), jnp.float32)
    p["s2"], p["b2"] = bn_params(ks[3], planes)
    p["w3"] = 0.1 * jax.random.normal(ks[4], (planes, out_planes), jnp.float32)
    p["s3"], p["b3"] = bn_params(ks[5], out_planes)
    if stride != 1 or in_planes != out_planes:
        p["w_sc"] = 0.1 * jax.random.normal(ks[6], (in_planes, out_planes), jnp.float32)
        p["s_sc"], p["b_sc"] = bn_params(ks[7], out_planes)
    else:
        p["w_sc"] = None
    return p


# ----------------------------------------------------------------------------
# Pure-JAX references
# ----------------------------------------------------------------------------
def reference_forward(x_nchw, p, *, stride=1, compute_dtype=jnp.bfloat16):
    """Mirrors the kernel's precision choices (BN folded into weights, operands
    rounded to compute_dtype, f32 accumulation)."""
    f32 = jnp.float32

    def q(a):                         # round to compute dtype, hold in f32
        return a.astype(compute_dtype).astype(f32)

    x = q(jnp.transpose(x_nchw, (0, 2, 3, 1)))
    w1 = q(p["w1"] * p["s1"])
    w2 = q(p["w2"] * p["s2"].reshape(1, 1, 1, -1))
    w3 = q(p["w3"] * p["s3"])

    o = jnp.maximum(jnp.einsum("nhwc,cd->nhwd", x, w1) + p["b1"], 0.0)
    o = q(o)
    dn = ("NHWC", "HWIO", "NHWC")
    o = lax.conv_general_dilated(o, w2, (stride, stride), [(1, 1), (1, 1)],
                                 dimension_numbers=dn)
    o = q(jnp.maximum(o + p["b2"], 0.0))
    o = jnp.einsum("nhwc,cd->nhwd", o, w3) + p["b3"]
    if p["w_sc"] is not None:
        xs = x[:, ::stride, ::stride, :]
        sc = jnp.einsum("nhwc,cd->nhwd", xs, q(p["w_sc"] * p["s_sc"])) + p["b_sc"]
    else:
        sc = x
    pre = o + sc
    out = jnp.maximum(pre, 0.0)
    return (jnp.transpose(out, (0, 3, 1, 2)), jnp.transpose(pre, (0, 3, 1, 2)))


def reference_forward_module(x_nchw, p, *, stride=1):
    """Strict f32 reference following the PyTorch module ordering
    (conv -> scale -> bias), used as a loose sanity check of BN folding."""
    x = jnp.transpose(x_nchw, (0, 2, 3, 1))
    dn = ("NHWC", "HWIO", "NHWC")
    o = jnp.maximum(jnp.einsum("nhwc,cd->nhwd", x, p["w1"]) * p["s1"] + p["b1"], 0.0)
    o = lax.conv_general_dilated(o, p["w2"], (stride, stride), [(1, 1), (1, 1)],
                                 dimension_numbers=dn)
    o = jnp.maximum(o * p["s2"] + p["b2"], 0.0)
    o = jnp.einsum("nhwc,cd->nhwd", o, p["w3"]) * p["s3"] + p["b3"]
    if p["w_sc"] is not None:
        xs = x[:, ::stride, ::stride, :]
        sc = jnp.einsum("nhwc,cd->nhwd", xs, p["w_sc"]) * p["s_sc"] + p["b_sc"]
    else:
        sc = x
    pre = o + sc
    out = jnp.maximum(pre, 0.0)
    return (jnp.transpose(out, (0, 3, 1, 2)), jnp.transpose(pre, (0, 3, 1, 2)))


# ----------------------------------------------------------------------------
if __name__ == "__main__":
    key = jax.random.PRNGKey(0)
    kx1, kp1, kx2, kp2 = jax.random.split(key, 4)

    # Config A (spec demo): projection shortcut, stride=1, is_last=True.
    N, IN_PLANES, PLANES, H, W = 2, 4, 4, 16, 16
    x_a = jax.random.normal(kx1, (N, IN_PLANES, H, W), jnp.float32)    # NCHW
    p_a = init_bottleneck_params(kp1, IN_PLANES, PLANES, stride=1)

    out_a, pre_a = bottleneck_forward(x_a, p_a, stride=1, is_last=True, tile_h=4)
    out_a = jax.block_until_ready(out_a)
    pre_a = jax.block_until_ready(pre_a)

    r_out, r_pre = reference_forward(x_a, p_a, stride=1)
    assert out_a.shape == (N, EXPANSION * PLANES, H, W)
    assert jnp.allclose(out_a, r_out, atol=1e-2, rtol=1e-2)
    assert jnp.allclose(pre_a, r_pre, atol=1e-2, rtol=1e-2)

    # Loose check against strict f32 module semantics (bf16 rounding noise only).
    m_out, m_pre = reference_forward_module(x_a, p_a, stride=1)
    assert jnp.allclose(out_a, m_out, atol=5e-2, rtol=5e-2)
    assert jnp.allclose(pre_a, m_pre, atol=5e-2, rtol=5e-2)

    # Config B: identity shortcut (in_planes == 4*planes), is_last=False.
    IN_B = EXPANSION * PLANES
    x_b = jax.random.normal(kx2, (N, IN_B, H, W), jnp.float32)
    p_b = init_bottleneck_params(kp2, IN_B, PLANES, stride=1)
    out_b = jax.block_until_ready(
        bottleneck_forward(x_b, p_b, stride=1, is_last=False, tile_h=8))
    r_out_b, _ = reference_forward(x_b, p_b, stride=1)
    assert jnp.allclose(out_b, r_out_b, atol=1e-2, rtol=1e-2)

    print("KERNEL_OK")
</pallas_src>

<mosaic_0001>
module attributes {stable_mosaic.version = 11 : i64} {
  func.func @_bottleneck_fused_kernel(%arg0: i32, %arg1: i32, %arg2: memref<1x16x16x4xbf16, #tpu.memory_space<vmem>>, %arg3: memref<4x4xbf16, #tpu.memory_space<vmem>>, %arg4: memref<1x4xf32, #tpu.memory_space<vmem>>, %arg5: memref<3x3x4x4xbf16, #tpu.memory_space<vmem>>, %arg6: memref<1x4xf32, #tpu.memory_space<vmem>>, %arg7: memref<4x16xbf16, #tpu.memory_space<vmem>>, %arg8: memref<1x16xf32, #tpu.memory_space<vmem>>, %arg9: memref<4x16xbf16, #tpu.memory_space<vmem>>, %arg10: memref<1x16xf32, #tpu.memory_space<vmem>>, %arg11: memref<1x4x16x16xf32, #tpu.memory_space<vmem>>, %arg12: memref<1x4x16x16xf32, #tpu.memory_space<vmem>>, %arg13: memref<6x18x4xbf16, #tpu.memory_space<vmem>>) attributes {dimension_semantics = [#tpu.dimension_semantics<parallel>, #tpu.dimension_semantics<parallel>], iteration_bounds = array<i64: 2, 4>, scalar_prefetch = 0 : i64, scratch_operands = 1 : i64, tpu.core_type = #tpu.core_type<tc>, window_params = [{transform_indices = @transform_0, window_bounds = array<i64: 1, 16, 16, 4>}, {pipeline_mode = #tpu.pipeline_mode<synchronous>, transform_indices = @transform_1, window_bounds = array<i64: 4, 4>}, {pipeline_mode = #tpu.pipeline_mode<synchronous>, transform_indices = @transform_2, window_bounds = array<i64: 1, 4>}, {pipeline_mode = #tpu.pipeline_mode<synchronous>, transform_indices = @transform_3, window_bounds = array<i64: 3, 3, 4, 4>}, {pipeline_mode = #tpu.pipeline_mode<synchronous>, transform_indices = @transform_4, window_bounds = array<i64: 1, 4>}, {pipeline_mode = #tpu.pipeline_mode<synchronous>, transform_indices = @transform_5, window_bounds = array<i64: 4, 16>}, {pipeline_mode = #tpu.pipeline_mode<synchronous>, transform_indices = @transform_6, window_bounds = array<i64: 1, 16>}, {pipeline_mode = #tpu.pipeline_mode<synchronous>, transform_indices = @transform_7, window_bounds = array<i64: 4, 16>}, {pipeline_mode = #tpu.pipeline_mode<synchronous>, transform_indices = @transform_8, window_bounds = array<i64: 1, 16>}, {transform_indices = @transform_9, window_bounds = array<i64: 1, 4, 16, 16>}, {transform_indices = @transform_10, window_bounds = array<i64: 1, 4, 16, 16>}]} {
    %c4_i32 = arith.constant 4 : i32
    %0 = arith.muli %arg1, %c4_i32 : i32
    %c0 = arith.constant 0 : index
    %c0_0 = arith.constant 0 : index
    %1 = vector.load %arg3[%c0, %c0_0] : memref<4x4xbf16, #tpu.memory_space<vmem>>, vector<4x4xbf16>
    %c0_1 = arith.constant 0 : index
    %c0_2 = arith.constant 0 : index
    %2 = vector.load %arg4[%c0_1, %c0_2] : memref<1x4xf32, #tpu.memory_space<vmem>>, vector<1x4xf32>
    %cst = arith.constant 0.000000e+00 : bf16
    %3 = vector.broadcast %cst : bf16 to vector<6x18x4xbf16>
    %c0_3 = arith.constant 0 : index
    %c0_4 = arith.constant 0 : index
    %c0_5 = arith.constant 0 : index
    %4 = vector.load %arg13[%c0_3, %c0_4, %c0_5] : memref<6x18x4xbf16, #tpu.memory_space<vmem>>, vector<6x18x4xbf16>
    tpu.vector_store %arg13[%c0_3, %c0_4, %c0_5], %3 {strides = array<i32>} : memref<6x18x4xbf16, #tpu.memory_space<vmem>>, vector<6x18x4xbf16>,
    %c0_6 = arith.constant 0 : index
    %5 = arith.index_cast %0 : i32 to index
    %c0_7 = arith.constant 0 : index
    %c0_8 = arith.constant 0 : index
    %6 = vector.load %arg2[%c0_6, %5, %c0_7, %c0_8] : memref<1x16x16x4xbf16, #tpu.memory_space<vmem>>, vector<1x4x16x4xbf16>
    %7 = vector.shape_cast %6 : vector<1x4x16x4xbf16> to vector<4x16x4xbf16>
    %8 = vector.shape_cast %7 : vector<4x16x4xbf16> to vector<64x4xbf16>
    %cst_9 = arith.constant dense<0.000000e+00> : vector<64x4xf32>
    %9 = tpu.matmul %8, %1, %cst_9 {dimension_numbers = #tpu.dot_dimension_numbers<[1], [0], [0], [1], [0, 0, 1, 1], [], []>} : vector<64x4xbf16>, vector<4x4xbf16>, vector<64x4xf32> -> vector<64x4xf32>
    %10 = vector.broadcast %2 : vector<1x4xf32> to vector<64x4xf32>
    %11 = arith.addf %9, %10 : vector<64x4xf32>
    %cst_10 = arith.constant 0.000000e+00 : f32
    %12 = vector.broadcast %cst_10 : f32 to vector<64x4xf32>
    %13 = arith.maximumf %11, %12 : vector<64x4xf32>
    %14 = vector.shape_cast %13 : vector<64x4xf32> to vector<4x16x4xf32>
    %15 = arith.truncf %14 : vector<4x16x4xf32> to vector<4x16x4xbf16>
    %c1 = arith.constant 1 : index
    %c1_11 = arith.constant 1 : index
    %c0_12 = arith.constant 0 : index
    %16 = vector.load %arg13[%c1, %c1_11, %c0_12] : memref<6x18x4xbf16, #tpu.memory_space<vmem>>, vector<4x16x4xbf16>
    tpu.vector_store %arg13[%c1, %c1_11, %c0_12], %15 {strides = array<i32>} : memref<6x18x4xbf16, #tpu.memory_space<vmem>>, vector<4x16x4xbf16>,
    %c0_i32 = arith.constant 0 : i32
    %17 = arith.cmpi sgt, %0, %c0_i32 : i32
    %18 = arith.extui %17 : i1 to i32
    %c0_i32_13 = arith.constant 0 : i32
    %19 = arith.cmpi ne, %18, %c0_i32_13 : i32
    scf.if %19 {
      %c1_i32 = arith.constant 1 : i32
      %106 = arith.subi %0, %c1_i32 : i32
      %c0_113 = arith.constant 0 : index
      %107 = arith.index_cast %106 : i32 to index
      %c0_114 = arith.constant 0 : index
      %c0_115 = arith.constant 0 : index
      %108 = vector.load %arg2[%c0_113, %107, %c0_114, %c0_115] : memref<1x16x16x4xbf16, #tpu.memory_space<vmem>>, vector<1x1x16x4xbf16>
      %109 = vector.shape_cast %108 : vector<1x1x16x4xbf16> to vector<1x16x4xbf16>
      %110 = vector.shape_cast %109 : vector<1x16x4xbf16> to vector<16x4xbf16>
      %cst_116 = arith.constant dense<0.000000e+00> : vector<16x4xf32>
      %111 = tpu.matmul %110, %1, %cst_116 {dimension_numbers = #tpu.dot_dimension_numbers<[1], [0], [0], [1], [0, 0, 1, 1], [], []>} : vector<16x4xbf16>, vector<4x4xbf16>, vector<16x4xf32> -> vector<16x4xf32>
      %112 = vector.broadcast %2 : vector<1x4xf32> to vector<16x4xf32>
      %113 = arith.addf %111, %112 : vector<16x4xf32>
      %cst_117 = arith.constant 0.000000e+00 : f32
      %114 = vector.broadcast %cst_117 : f32 to vector<16x4xf32>
      %115 = arith.maximumf %113, %114 : vector<16x4xf32>
      %116 = vector.shape_cast %115 : vector<16x4xf32> to vector<1x16x4xf32>
      %117 = arith.truncf %116 : vector<1x16x4xf32> to vector<1x16x4xbf16>
      %c0_118 = arith.constant 0 : index
      %c1_119 = arith.constant 1 : index
      %c0_120 = arith.constant 0 : index
      %118 = vector.load %arg13[%c0_118, %c1_119, %c0_120] : memref<6x18x4xbf16, #tpu.memory_space<vmem>>, vector<1x16x4xbf16>
      tpu.vector_store %arg13[%c0_118, %c1_119, %c0_120], %117 {strides = array<i32>} : memref<6x18x4xbf16, #tpu.memory_space<vmem>>, vector<1x16x4xbf16>,
    } else {
    }
    %c4_i32_14 = arith.constant 4 : i32
    %20 = arith.addi %0, %c4_i32_14 : i32
    %c16_i32 = arith.constant 16 : i32
    %21 = arith.cmpi slt, %20, %c16_i32 : i32
    %22 = arith.extui %21 : i1 to i32
    %c0_i32_15 = arith.constant 0 : i32
    %23 = arith.cmpi ne, %22, %c0_i32_15 : i32
    scf.if %23 {
      %c0_113 = arith.constant 0 : index
      %106 = arith.index_cast %20 : i32 to index
      %c0_114 = arith.constant 0 : index
      %c0_115 = arith.constant 0 : index
      %107 = vector.load %arg2[%c0_113, %106, %c0_114, %c0_115] : memref<1x16x16x4xbf16, #tpu.memory_space<vmem>>, vector<1x1x16x4xbf16>
      %108 = vector.shape_cast %107 : vector<1x1x16x4xbf16> to vector<1x16x4xbf16>
      %109 = vector.shape_cast %108 : vector<1x16x4xbf16> to vector<16x4xbf16>
      %cst_116 = arith.constant dense<0.000000e+00> : vector<16x4xf32>
      %110 = tpu.matmul %109, %1, %cst_116 {dimension_numbers = #tpu.dot_dimension_numbers<[1], [0], [0], [1], [0, 0, 1, 1], [], []>} : vector<16x4xbf16>, vector<4x4xbf16>, vector<16x4xf32> -> vector<16x4xf32>
      %111 = vector.broadcast %2 : vector<1x4xf32> to vector<16x4xf32>
      %112 = arith.addf %110, %111 : vector<16x4xf32>
      %cst_117 = arith.constant 0.000000e+00 : f32
      %113 = vector.broadcast %cst_117 : f32 to vector<16x4xf32>
      %114 = arith.maximumf %112, %113 : vector<16x4xf32>
      %115 = vector.shape_cast %114 : vector<16x4xf32> to vector<1x16x4xf32>
      %116 = arith.truncf %115 : vector<1x16x4xf32> to vector<1x16x4xbf16>
      %c5 = arith.constant 5 : index
      %c1_118 = arith.constant 1 : index
      %c0_119 = arith.constant 0 : index
      %117 = vector.load %arg13[%c5, %c1_118, %c0_119] : memref<6x18x4xbf16, #tpu.memory_space<vmem>>, vector<1x16x4xbf16>
      tpu.vector_store %arg13[%c5, %c1_118, %c0_119], %116 {strides = array<i32>} : memref<6x18x4xbf16, #tpu.memory_space<vmem>>, vector<1x16x4xbf16>,
    } else {
    }
    %cst_16 = arith.constant 0.000000e+00 : f32
    %24 = vector.broadcast %cst_16 : f32 to vector<64x4xf32>
    %c0_17 = arith.constant 0 : index
    %c0_18 = arith.constant 0 : index
    %c0_19 = arith.constant 0 : index
    %25 = vector.load %arg13[%c0_17, %c0_18, %c0_19] : memref<6x18x4xbf16, #tpu.memory_space<vmem>>, vector<4x16x4xbf16>
    %26 = vector.shape_cast %25 : vector<4x16x4xbf16> to vector<64x4xbf16>
    %c0_20 = arith.constant 0 : index
    %c0_21 = arith.constant 0 : index
    %c0_22 = arith.constant 0 : index
    %c0_23 = arith.constant 0 : index
    %27 = vector.load %arg5[%c0_20, %c0_21, %c0_22, %c0_23] : memref<3x3x4x4xbf16, #tpu.memory_space<vmem>>, vector<1x1x4x4xbf16>
    %28 = vector.shape_cast %27 : vector<1x1x4x4xbf16> to vector<4x4xbf16>
    %cst_24 = arith.constant dense<0.000000e+00> : vector<64x4xf32>
    %29 = tpu.matmul %26, %28, %cst_24 {dimension_numbers = #tpu.dot_dimension_numbers<[1], [0], [0], [1], [0, 0, 1, 1], [], []>} : vector<64x4xbf16>, vector<4x4xbf16>, vector<64x4xf32> -> vector<64x4xf32>
    %30 = arith.addf %24, %29 : vector<64x4xf32>
    %c0_25 = arith.constant 0 : index
    %c1_26 = arith.constant 1 : index
    %c0_27 = arith.constant 0 : index
    %31 = vector.load %arg13[%c0_25, %c1_26, %c0_27] : memref<6x18x4xbf16, #tpu.memory_space<vmem>>, vector<4x16x4xbf16>
    %32 = vector.shape_cast %31 : vector<4x16x4xbf16> to vector<64x4xbf16>
    %c0_28 = arith.constant 0 : index
    %c1_29 = arith.constant 1 : index
    %c0_30 = arith.constant 0 : index
    %c0_31 = arith.constant 0 : index
    %33 = vector.load %arg5[%c0_28, %c1_29, %c0_30, %c0_31] : memref<3x3x4x4xbf16, #tpu.memory_space<vmem>>, vector<1x1x4x4xbf16>
    %34 = vector.shape_cast %33 : vector<1x1x4x4xbf16> to vector<4x4xbf16>
    %cst_32 = arith.constant dense<0.000000e+00> : vector<64x4xf32>
    %35 = tpu.matmul %32, %34, %cst_32 {dimension_numbers = #tpu.dot_dimension_numbers<[1], [0], [0], [1], [0, 0, 1, 1], [], []>} : vector<64x4xbf16>, vector<4x4xbf16>, vector<64x4xf32> -> vector<64x4xf32>
    %36 = arith.addf %30, %35 : vector<64x4xf32>
    %c0_33 = arith.constant 0 : index
    %c2 = arith.constant 2 : index
    %c0_34 = arith.constant 0 : index
    %37 = vector.load %arg13[%c0_33, %c2, %c0_34] : memref<6x18x4xbf16, #tpu.memory_space<vmem>>, vector<4x16x4xbf16>
    %38 = vector.shape_cast %37 : vector<4x16x4xbf16> to vector<64x4xbf16>
    %c0_35 = arith.constant 0 : index
    %c2_36 = arith.constant 2 : index
    %c0_37 = arith.constant 0 : index
    %c0_38 = arith.constant 0 : index
    %39 = vector.load %arg5[%c0_35, %c2_36, %c0_37, %c0_38] : memref<3x3x4x4xbf16, #tpu.memory_space<vmem>>, vector<1x1x4x4xbf16>
    %40 = vector.shape_cast %39 : vector<1x1x4x4xbf16> to vector<4x4xbf16>
    %cst_39 = arith.constant dense<0.000000e+00> : vector<64x4xf32>
    %41 = tpu.matmul %38, %40, %cst_39 {dimension_numbers = #tpu.dot_dimension_numbers<[1], [0], [0], [1], [0, 0, 1, 1], [], []>} : vector<64x4xbf16>, vector<4x4xbf16>, vector<64x4xf32> -> vector<64x4xf32>
    %42 = arith.addf %36, %41 : vector<64x4xf32>
    %c1_40 = arith.constant 1 : index
    %c0_41 = arith.constant 0 : index
    %c0_42 = arith.constant 0 : index
    %43 = vector.load %arg13[%c1_40, %c0_41, %c0_42] : memref<6x18x4xbf16, #tpu.memory_space<vmem>>, vector<4x16x4xbf16>
    %44 = vector.shape_cast %43 : vector<4x16x4xbf16> to vector<64x4xbf16>
    %c1_43 = arith.constant 1 : index
    %c0_44 = arith.constant 0 : index
    %c0_45 = arith.constant 0 : index
    %c0_46 = arith.constant 0 : index
    %45 = vector.load %arg5[%c1_43, %c0_44, %c0_45, %c0_46] : memref<3x3x4x4xbf16, #tpu.memory_space<vmem>>, vector<1x1x4x4xbf16>
    %46 = vector.shape_cast %45 : vector<1x1x4x4xbf16> to vector<4x4xbf16>
    %cst_47 = arith.constant dense<0.000000e+00> : vector<64x4xf32>
    %47 = tpu.matmul %44, %46, %cst_47 {dimension_numbers = #tpu.dot_dimension_numbers<[1], [0], [0], [1], [0, 0, 1, 1], [], []>} : vector<64x4xbf16>, vector<4x4xbf16>, vector<64x4xf32> -> vector<64x4xf32>
    %48 = arith.addf %42, %47 : vector<64x4xf32>
    %c1_48 = arith.constant 1 : index
    %c1_49 = arith.constant 1 : index
    %c0_50 = arith.constant 0 : index
    %49 = vector.load %arg13[%c1_48, %c1_49, %c0_50] : memref<6x18x4xbf16, #tpu.memory_space<vmem>>, vector<4x16x4xbf16>
    %50 = vector.shape_cast %49 : vector<4x16x4xbf16> to vector<64x4xbf16>
    %c1_51 = arith.constant 1 : index
    %c1_52 = arith.constant 1 : index
    %c0_53 = arith.constant 0 : index
    %c0_54 = arith.constant 0 : index
    %51 = vector.load %arg5[%c1_51, %c1_52, %c0_53, %c0_54] : memref<3x3x4x4xbf16, #tpu.memory_space<vmem>>, vector<1x1x4x4xbf16>
    %52 = vector.shape_cast %51 : vector<1x1x4x4xbf16> to vector<4x4xbf16>
    %cst_55 = arith.constant dense<0.000000e+00> : vector<64x4xf32>
    %53 = tpu.matmul %50, %52, %cst_55 {dimension_numbers = #tpu.dot_dimension_numbers<[1], [0], [0], [1], [0, 0, 1, 1], [], []>} : vector<64x4xbf16>, vector<4x4xbf16>, vector<64x4xf32> -> vector<64x4xf32>
    %54 = arith.addf %48, %53 : vector<64x4xf32>
    %c1_56 = arith.constant 1 : index
    %c2_57 = arith.constant 2 : index
    %c0_58 = arith.constant 0 : index
    %55 = vector.load %arg13[%c1_56, %c2_57, %c0_58] : memref<6x18x4xbf16, #tpu.memory_space<vmem>>, vector<4x16x4xbf16>
    %56 = vector.shape_cast %55 : vector<4x16x4xbf16> to vector<64x4xbf16>
    %c1_59 = arith.constant 1 : index
    %c2_60 = arith.constant 2 : index
    %c0_61 = arith.constant 0 : index
    %c0_62 = arith.constant 0 : index
    %57 = vector.load %arg5[%c1_59, %c2_60, %c0_61, %c0_62] : memref<3x3x4x4xbf16, #tpu.memory_space<vmem>>, vector<1x1x4x4xbf16>
    %58 = vector.shape_cast %57 : vector<1x1x4x4xbf16> to vector<4x4xbf16>
    %cst_63 = arith.constant dense<0.000000e+00> : vector<64x4xf32>
    %59 = tpu.matmul %56, %58, %cst_63 {dimension_numbers = #tpu.dot_dimension_numbers<[1], [0], [0], [1], [0, 0, 1, 1], [], []>} : vector<64x4xbf16>, vector<4x4xbf16>, vector<64x4xf32> -> vector<64x4xf32>
    %60 = arith.addf %54, %59 : vector<64x4xf32>
    %c2_64 = arith.constant 2 : index
    %c0_65 = arith.constant 0 : index
    %c0_66 = arith.constant 0 : index
    %61 = vector.load %arg13[%c2_64, %c0_65, %c0_66] : memref<6x18x4xbf16, #tpu.memory_space<vmem>>, vector<4x16x4xbf16>
    %62 = vector.shape_cast %61 : vector<4x16x4xbf16> to vector<64x4xbf16>
    %c2_67 = arith.constant 2 : index
    %c0_68 = arith.constant 0 : index
    %c0_69 = arith.constant 0 : index
    %c0_70 = arith.constant 0 : index
    %63 = vector.load %arg5[%c2_67, %c0_68, %c0_69, %c0_70] : memref<3x3x4x4xbf16, #tpu.memory_space<vmem>>, vector<1x1x4x4xbf16>
    %64 = vector.shape_cast %63 : vector<1x1x4x4xbf16> to vector<4x4xbf16>
    %cst_71 = arith.constant dense<0.000000e+00> : vector<64x4xf32>
    %65 = tpu.matmul %62, %64, %cst_71 {dimension_numbers = #tpu.dot_dimension_numbers<[1], [0], [0], [1], [0, 0, 1, 1], [], []>} : vector<64x4xbf16>, vector<4x4xbf16>, vector<64x4xf32> -> vector<64x4xf32>
    %66 = arith.addf %60, %65 : vector<64x4xf32>
    %c2_72 = arith.constant 2 : index
    %c1_73 = arith.constant 1 : index
    %c0_74 = arith.constant 0 : index
    %67 = vector.load %arg13[%c2_72, %c1_73, %c0_74] : memref<6x18x4xbf16, #tpu.memory_space<vmem>>, vector<4x16x4xbf16>
    %68 = vector.shape_cast %67 : vector<4x16x4xbf16> to vector<64x4xbf16>
    %c2_75 = arith.constant 2 : index
    %c1_76 = arith.constant 1 : index
    %c0_77 = arith.constant 0 : index
    %c0_78 = arith.constant 0 : index
    %69 = vector.load %arg5[%c2_75, %c1_76, %c0_77, %c0_78] : memref<3x3x4x4xbf16, #tpu.memory_space<vmem>>, vector<1x1x4x4xbf16>
    %70 = vector.shape_cast %69 : vector<1x1x4x4xbf16> to vector<4x4xbf16>
    %cst_79 = arith.constant dense<0.000000e+00> : vector<64x4xf32>
    %71 = tpu.matmul %68, %70, %cst_79 {dimension_numbers = #tpu.dot_dimension_numbers<[1], [0], [0], [1], [0, 0, 1, 1], [], []>} : vector<64x4xbf16>, vector<4x4xbf16>, vector<64x4xf32> -> vector<64x4xf32>
    %72 = arith.addf %66, %71 : vector<64x4xf32>
    %c2_80 = arith.constant 2 : index
    %c2_81 = arith.constant 2 : index
    %c0_82 = arith.constant 0 : index
    %73 = vector.load %arg13[%c2_80, %c2_81, %c0_82] : memref<6x18x4xbf16, #tpu.memory_space<vmem>>, vector<4x16x4xbf16>
    %74 = vector.shape_cast %73 : vector<4x16x4xbf16> to vector<64x4xbf16>
    %c2_83 = arith.constant 2 : index
    %c2_84 = arith.constant 2 : index
    %c0_85 = arith.constant 0 : index
    %c0_86 = arith.constant 0 : index
    %75 = vector.load %arg5[%c2_83, %c2_84, %c0_85, %c0_86] : memref<3x3x4x4xbf16, #tpu.memory_space<vmem>>, vector<1x1x4x4xbf16>
    %76 = vector.shape_cast %75 : vector<1x1x4x4xbf16> to vector<4x4xbf16>
    %cst_87 = arith.constant dense<0.000000e+00> : vector<64x4xf32>
    %77 = tpu.matmul %74, %76, %cst_87 {dimension_numbers = #tpu.dot_dimension_numbers<[1], [0], [0], [1], [0, 0, 1, 1], [], []>} : vector<64x4xbf16>, vector<4x4xbf16>, vector<64x4xf32> -> vector<64x4xf32>
    %78 = arith.addf %72, %77 : vector<64x4xf32>
    %c0_88 = arith.constant 0 : index
    %c0_89 = arith.constant 0 : index
    %79 = vector.load %arg6[%c0_88, %c0_89] : memref<1x4xf32, #tpu.memory_space<vmem>>, vector<1x4xf32>
    %80 = vector.broadcast %79 : vector<1x4xf32> to vector<64x4xf32>
    %81 = arith.addf %78, %80 : vector<64x4xf32>
    %cst_90 = arith.constant 0.000000e+00 : f32
    %82 = vector.broadcast %cst_90 : f32 to vector<64x4xf32>
    %83 = arith.maximumf %81, %82 : vector<64x4xf32>
    %84 = arith.truncf %83 : vector<64x4xf32> to vector<64x4xbf16>
    %c0_91 = arith.constant 0 : index
    %c0_92 = arith.constant 0 : index
    %85 = vector.load %arg7[%c0_91, %c0_92] : memref<4x16xbf16, #tpu.memory_space<vmem>>, vector<4x16xbf16>
    %cst_93 = arith.constant dense<0.000000e+00> : vector<64x16xf32>
    %86 = tpu.matmul %84, %85, %cst_93 {dimension_numbers = #tpu.dot_dimension_numbers<[1], [0], [0], [1], [0, 0, 1, 1], [], []>} : vector<64x4xbf16>, vector<4x16xbf16>, vector<64x16xf32> -> vector<64x16xf32>
    %c0_94 = arith.constant 0 : index
    %c0_95 = arith.constant 0 : index
    %87 = vector.load %arg8[%c0_94, %c0_95] : memref<1x16xf32, #tpu.memory_space<vmem>>, vector<1x16xf32>
    %88 = vector.broadcast %87 : vector<1x16xf32> to vector<64x16xf32>
    %89 = arith.addf %86, %88 : vector<64x16xf32>
    %c0_96 = arith.constant 0 : index
    %90 = arith.index_cast %0 : i32 to index
    %c0_97 = arith.constant 0 : index
    %c0_98 = arith.constant 0 : index
    %91 = vector.load %arg2[%c0_96, %90, %c0_97, %c0_98] : memref<1x16x16x4xbf16, #tpu.memory_space<vmem>>, vector<1x4x16x4xbf16>
    %92 = vector.shape_cast %91 : vector<1x4x16x4xbf16> to vector<4x16x4xbf16>
    %93 = vector.shape_cast %92 : vector<4x16x4xbf16> to vector<64x4xbf16>
    %c0_99 = arith.constant 0 : index
    %c0_100 = arith.constant 0 : index
    %94 = vector.load %arg9[%c0_99, %c0_100] : memref<4x16xbf16, #tpu.memory_space<vmem>>, vector<4x16xbf16>
    %cst_101 = arith.constant dense<0.000000e+00> : vector<64x16xf32>
    %95 = tpu.matmul %93, %94, %cst_101 {dimension_numbers = #tpu.dot_dimension_numbers<[1], [0], [0], [1], [0, 0, 1, 1], [], []>} : vector<64x4xbf16>, vector<4x16xbf16>, vector<64x16xf32> -> vector<64x16xf32>
    %c0_102 = arith.constant 0 : index
    %c0_103 = arith.constant 0 : index
    %96 = vector.load %arg10[%c0_102, %c0_103] : memref<1x16xf32, #tpu.memory_space<vmem>>, vector<1x16xf32>
    %97 = vector.broadcast %96 : vector<1x16xf32> to vector<64x16xf32>
    %98 = arith.addf %95, %97 : vector<64x16xf32>
    %99 = arith.addf %89, %98 : vector<64x16xf32>
    %cst_104 = arith.constant 0.000000e+00 : f32
    %100 = vector.broadcast %cst_104 : f32 to vector<64x16xf32>
    %101 = arith.maximumf %99, %100 : vector<64x16xf32>
    %102 = vector.shape_cast %101 : vector<64x16xf32> to vector<1x4x16x16xf32>
    %c0_105 = arith.constant 0 : index
    %c0_106 = arith.constant 0 : index
    %c0_107 = arith.constant 0 : index
    %c0_108 = arith.constant 0 : index
    %103 = vector.load %arg11[%c0_105, %c0_106, %c0_107, %c0_108] : memref<1x4x16x16xf32, #tpu.memory_space<vmem>>, vector<1x4x16x16xf32>
    tpu.vector_store %arg11[%c0_105, %c0_106, %c0_107, %c0_108], %102 {strides = array<i32>} : memref<1x4x16x16xf32, #tpu.memory_space<vmem>>, vector<1x4x16x16xf32>,
    %104 = vector.shape_cast %99 : vector<64x16xf32> to vector<1x4x16x16xf32>
    %c0_109 = arith.constant 0 : index
    %c0_110 = arith.constant 0 : index
    %c0_111 = arith.constant 0 : index
    %c0_112 = arith.constant 0 : index
    %105 = vector.load %arg12[%c0_109, %c0_110, %c0_111, %c0_112] : memref<1x4x16x16xf32, #tpu.memory_space<vmem>>, vector<1x4x16x16xf32>
    tpu.vector_store %arg12[%c0_109, %c0_110, %c0_111, %c0_112], %104 {strides = array<i32>} : memref<1x4x16x16xf32, #tpu.memory_space<vmem>>, vector<1x4x16x16xf32>,
    return
  }
  func.func @transform_0(%arg0: i32, %arg1: i32) -> (i32, i32, i32, i32) {
    %c0_i32 = arith.constant 0 : i32
    %c0_i32_0 = arith.constant 0 : i32
    %c0_i32_1 = arith.constant 0 : i32
    %c0_i32_2 = arith.constant 0 : i32
    return %arg0, %c0_i32, %c0_i32_0, %c0_i32_1 : i32, i32, i32, i32
  }
  func.func @transform_1(%arg0: i32, %arg1: i32) -> (i32, i32) {
    %c0_i32 = arith.constant 0 : i32
    %c0_i32_0 = arith.constant 0 : i32
    %c0_i32_1 = arith.constant 0 : i32
    return %c0_i32, %c0_i32_0 : i32, i32
  }
  func.func @transform_2(%arg0: i32, %arg1: i32) -> (i32, i32) {
    %c0_i32 = arith.constant 0 : i32
    %c0_i32_0 = arith.constant 0 : i32
    %c0_i32_1 = arith.constant 0 : i32
    return %c0_i32, %c0_i32_0 : i32, i32
  }
  func.func @transform_3(%arg0: i32, %arg1: i32) -> (i32, i32, i32, i32) {
    %c0_i32 = arith.constant 0 : i32
    %c0_i32_0 = arith.constant 0 : i32
    %c0_i32_1 = arith.constant 0 : i32
    %c0_i32_2 = arith.constant 0 : i32
    %c0_i32_3 = arith.constant 0 : i32
    return %c0_i32, %c0_i32_0, %c0_i32_1, %c0_i32_2 : i32, i32, i32, i32
  }
  func.func @transform_4(%arg0: i32, %arg1: i32) -> (i32, i32) {
    %c0_i32 = arith.constant 0 : i32
    %c0_i32_0 = arith.constant 0 : i32
    %c0_i32_1 = arith.constant 0 : i32
    return %c0_i32, %c0_i32_0 : i32, i32
  }
  func.func @transform_5(%arg0: i32, %arg1: i32) -> (i32, i32) {
    %c0_i32 = arith.constant 0 : i32
    %c0_i32_0 = arith.constant 0 : i32
    %c0_i32_1 = arith.constant 0 : i32
    return %c0_i32, %c0_i32_0 : i32, i32
  }
  func.func @transform_6(%arg0: i32, %arg1: i32) -> (i32, i32) {
    %c0_i32 = arith.constant 0 : i32
    %c0_i32_0 = arith.constant 0 : i32
    %c0_i32_1 = arith.constant 0 : i32
    return %c0_i32, %c0_i32_0 : i32, i32
  }
  func.func @transform_7(%arg0: i32, %arg1: i32) -> (i32, i32) {
    %c0_i32 = arith.constant 0 : i32
    %c0_i32_0 = arith.constant 0 : i32
    %c0_i32_1 = arith.constant 0 : i32
    return %c0_i32, %c0_i32_0 : i32, i32
  }
  func.func @transform_8(%arg0: i32, %arg1: i32) -> (i32, i32) {
    %c0_i32 = arith.constant 0 : i32
    %c0_i32_0 = arith.constant 0 : i32
    %c0_i32_1 = arith.constant 0 : i32
    return %c0_i32, %c0_i32_0 : i32, i32
  }
  func.func @transform_9(%arg0: i32, %arg1: i32) -> (i32, i32, i32, i32) {
    %c0_i32 = arith.constant 0 : i32
    %c0_i32_0 = arith.constant 0 : i32
    %c0_i32_1 = arith.constant 0 : i32
    return %arg0, %arg1, %c0_i32, %c0_i32_0 : i32, i32, i32, i32
  }
  func.func @transform_10(%arg0: i32, %arg1: i32) -> (i32, i32, i32, i32) {
    %c0_i32 = arith.constant 0 : i32
    %c0_i32_0 = arith.constant 0 : i32
    %c0_i32_1 = arith.constant 0 : i32
    return %arg0, %arg1, %c0_i32, %c0_i32_0 : i32, i32, i32, i32
  }
}

</mosaic_0001>

<llo_original>
// kernel: tpu_custom_call.1
$region0: #{tpu_custom_call.1}
  #allocation0 [shape = 'u32[]', space=smem, size = 0x4, offset = 0x4, fixed_abs, tag = 'smem constant byte address 0x4 - core index']
  #allocation1 [shape = 'u32[144,128]{1,0:T(1,128)}', space=vmem, size = 0x12000, scoped, tag = 'internal scratch']
  #allocation2 [shape = 'bf16[6,18,4]{2,1,0:T(8,128)(2,1)}', space=vmem, size = 0x9000, scoped, tag = 'scratch operand']
  %s0 = inlined_call_operand.vmem [shape: bf16[2,16,16,4], index: 0, kind: input, shape index: {}]
  %s1 = inlined_call_operand.vmem [shape: bf16[4,4], index: 1, kind: input, shape index: {}]
  %s2 = inlined_call_operand.vmem [shape: f32[1,4], index: 2, kind: input, shape index: {}]
  %s3 = inlined_call_operand.vmem [shape: bf16[3,3,4,4], index: 3, kind: input, shape index: {}]
  %s4 = inlined_call_operand.vmem [shape: f32[1,4], index: 4, kind: input, shape index: {}]
  %s5 = inlined_call_operand.vmem [shape: bf16[4,16], index: 5, kind: input, shape index: {}]
  %s6 = inlined_call_operand.vmem [shape: f32[1,16], index: 6, kind: input, shape index: {}]
  %s7 = inlined_call_operand.vmem [shape: bf16[4,16], index: 7, kind: input, shape index: {}]
  %s8 = inlined_call_operand.vmem [shape: f32[1,16], index: 8, kind: input, shape index: {}]
  %s9 = inlined_call_operand.hbm [shape: f32[2,16,16,16], index: 9, kind: output, shape index: {0}]
  %s10 = inlined_call_operand.hbm [shape: f32[2,16,16,16], index: 10, kind: output, shape index: {1}]
  %11 = xla_tuple %s9, %s10
  %s12 = sld [smem:[#allocation0]]
  $region85: #{tpu_custom_call.1} parent=0
    _
  %s14 = ssub.s32 1, %s12
  %s15 = scalar_select 0, %s14, %s12
  $region1: #{tpu_custom_call.1} parent=0
    #allocation3 [shape = 'u8[65536]{0}', space=vmem, size = 0x10000, scoped, tag = 'output window, operand 0']
    #allocation4 [shape = 's32[2]{0}', space=sflag, size = 0x8, scoped, tag = 'scoped memory for tpu_custom_call.1']
    #allocation5 [shape = 'u8[65536]{0}', space=vmem, size = 0x10000, scoped, tag = 'output window, operand 1']
    #allocation6 [shape = 's32[2]{0}', space=sflag, size = 0x8, scoped, tag = 'scoped memory for tpu_custom_call.1']
    %16 = vsyncpa [#allocation4], 0
    %s17 = scalar_lea.sflag [#allocation4], 1
    %18 = vsyncpa %s17, 0
    %19 = vsyncpa [#allocation6], 0
    %s20 = scalar_lea.sflag [#allocation6], 1
    %21 = vsyncpa %s20, 0
    loop: start=0, step=1, limit=10
    $region2: #{tpu_custom_call.1} parent=1 // loop_pre_header
      _
    $region3: #{tpu_custom_call.1} parent=1 // loop_header
      %s23 = sphi 0, %s27
      %p24 = scmp.ge.s32.totalorder %s23, 10
      %s30 = sphi 0, %s42
      %s31 = sphi 0, %s38
      %s32 = sphi 0, %s30
      %s33 = sphi 0, %s31
      %s34 = sphi 0, %s32
      %s35 = sphi 0, %s33
      %s45 = sphi 0, %s47
      %s48 = sphi 0, %s45
      %s49 = sphi 0, %s48
      %s65 = sphi 0, %s49
      %s69 = sphi 0, %s69
      %s71 = sphi 0, %s69
      %s72 = sphi 0, %s71
      %s86 = sphi 0, %s72
      %s90 = sphi 0, %s90
      %s92 = sphi 0, %s90
      %s93 = sphi 0, %s92
      %s107 = sphi 0, %s93
      %s111 = sphi 0, %s111
      %s113 = sphi 0, %s111
      %s114 = sphi 0, %s113
      %s128 = sphi 0, %s114
      %s132 = sphi 0, %s132
      %s134 = sphi 0, %s132
      %s135 = sphi 0, %s134
      %s149 = sphi 0, %s135
      %s153 = sphi 0, %s153
      %s155 = sphi 0, %s153
      %s156 = sphi 0, %s155
      %s170 = sphi 0, %s156
      %s174 = sphi 0, %s174
      %s176 = sphi 0, %s174
      %s177 = sphi 0, %s176
      %s191 = sphi 0, %s177
      %s195 = sphi 0, %s195
      %s197 = sphi 0, %s195
      %s198 = sphi 0, %s197
      %s212 = sphi 0, %s198
      %s216 = sphi 0, %s216
      %s218 = sphi 0, %s216
      %s219 = sphi 0, %s218
      %s233 = sphi 0, %s219
      %s241 = sphi 0, %s243
      %s244 = sphi 0, %s241
      %s245 = sphi 0, %s244
      %s261 = sphi 0, %s245
      %s269 = sphi 0, %s271
      %s272 = sphi 0, %s269
      %s273 = sphi 0, %s272
      %s289 = sphi 0, %s273
    $region4: #{tpu_custom_call.1} parent=1 // loop_header_branch
      %26 = sbr.rel (%p24) target = $region8
    $region5: #{tpu_custom_call.1} parent=1 // loop_body
      %s28 = ssub.s32 %s23, 1
      %s29 = ssub.s32 %s23, 2
      %s36 = sadd.s32 1, %s31
      %p37 = scmp.ge.s32.totalorder %s36, 4
      %s38 = scalar_select %p37, 0, %s36
      %s39 = sadd.s32 1, %s30
      %s40 = scalar_select %p37, %s39, %s30
      %p41 = scmp.ge.s32.totalorder %s40, 2
      %s42 = scalar_select %p41, 0, %s40
      %s43 = ssub.s32 %s30, %s42
      %p44 = scmp.eq.s32.totalorder %s43, 0
      %s46 = sadd.s32 %s45, 1
      %s47 = scalar_select %p44, %s45, %s46
      %p50 = pneg %p44
      %p51 = scmp.eq.s32.totalorder %s23, 7
      %p52 = por %p50, %p51
      %p53 = scmp.ne.s32.totalorder %s45, %s48
      %p54 = scmp.eq.s32.totalorder %s23, 0
      %p55 = por %p53, %p54
      %p56 = scmp.ne.s32.totalorder %s45, %s48
      %p57 = scmp.eq.s32.totalorder %s28, 7
      %p58 = por %p56, %p57
      %p59 = scmp.ne.s32.totalorder %s48, %s49
      %p60 = scmp.eq.s32.totalorder %s28, 0
      %p61 = por %p59, %p60
      %p62 = scmp.ne.s32.totalorder %s48, %s49
      %p63 = scmp.eq.s32.totalorder %s29, 7
      %p64 = por %p62, %p63
      %p66 = scmp.ne.s32.totalorder %s49, %s65
      %p67 = scmp.eq.s32.totalorder %s29, 0
      %p68 = por %p66, %p67
      %s70 = sadd.s32 %s69, 1
      %p73 = scmp.eq.s32.totalorder %s23, 7
      %p74 = scmp.ne.s32.totalorder %s69, %s71
      %p75 = scmp.eq.s32.totalorder %s23, 0
      %p76 = por %p74, %p75
      %p77 = scmp.ne.s32.totalorder %s69, %s71
      %p78 = scmp.eq.s32.totalorder %s28, 7
      %p79 = por %p77, %p78
      %p80 = scmp.ne.s32.totalorder %s71, %s72
      %p81 = scmp.eq.s32.totalorder %s28, 0
      %p82 = por %p80, %p81
      %p83 = scmp.ne.s32.totalorder %s71, %s72
      %p84 = scmp.eq.s32.totalorder %s29, 7
      %p85 = por %p83, %p84
      %p87 = scmp.ne.s32.totalorder %s72, %s86
      %p88 = scmp.eq.s32.totalorder %s29, 0
      %p89 = por %p87, %p88
      %s91 = sadd.s32 %s90, 1
      %p94 = scmp.eq.s32.totalorder %s23, 7
      %p95 = scmp.ne.s32.totalorder %s90, %s92
      %p96 = scmp.eq.s32.totalorder %s23, 0
      %p97 = por %p95, %p96
      %p98 = scmp.ne.s32.totalorder %s90, %s92
      %p99 = scmp.eq.s32.totalorder %s28, 7
      %p100 = por %p98, %p99
      %p101 = scmp.ne.s32.totalorder %s92, %s93
      %p102 = scmp.eq.s32.totalorder %s28, 0
      %p103 = por %p101, %p102
      %p104 = scmp.ne.s32.totalorder %s92, %s93
      %p105 = scmp.eq.s32.totalorder %s29, 7
      %p106 = por %p104, %p105
      %p108 = scmp.ne.s32.totalorder %s93, %s107
      %p109 = scmp.eq.s32.totalorder %s29, 0
      %p110 = por %p108, %p109
      %s112 = sadd.s32 %s111, 1
      %p115 = scmp.eq.s32.totalorder %s23, 7
      %p116 = scmp.ne.s32.totalorder %s111, %s113
      %p117 = scmp.eq.s32.totalorder %s23, 0
      %p118 = por %p116, %p117
      %p119 = scmp.ne.s32.totalorder %s111, %s113
      %p120 = scmp.eq.s32.totalorder %s28, 7
      %p121 = por %p119, %p120
      %p122 = scmp.ne.s32.totalorder %s113, %s114
      %p123 = scmp.eq.s32.totalorder %s28, 0
      %p124 = por %p122, %p123
      %p125 = scmp.ne.s32.totalorder %s113, %s114
      %p126 = scmp.eq.s32.totalorder %s29, 7
      %p127 = por %p125, %p126
      %p129 = scmp.ne.s32.totalorder %s114, %s128
      %p130 = scmp.eq.s32.totalorder %s29, 0
      %p131 = por %p129, %p130
      %s133 = sadd.s32 %s132, 1
      %p136 = scmp.eq.s32.totalorder %s23, 7
      %p137 = scmp.ne.s32.totalorder %s132, %s134
      %p138 = scmp.eq.s32.totalorder %s23, 0
      %p139 = por %p137, %p138
      %p140 = scmp.ne.s32.totalorder %s132, %s134
      %p141 = scmp.eq.s32.totalorder %s28, 7
      %p142 = por %p140, %p141
      %p143 = scmp.ne.s32.totalorder %s134, %s135
      %p144 = scmp.eq.s32.totalorder %s28, 0
      %p145 = por %p143, %p144
      %p146 = scmp.ne.s32.totalorder %s134, %s135
      %p147 = scmp.eq.s32.totalorder %s29, 7
      %p148 = por %p146, %p147
      %p150 = scmp.ne.s32.totalorder %s135, %s149
      %p151 = scmp.eq.s32.totalorder %s29, 0
      %p152 = por %p150, %p151
      %s154 = sadd.s32 %s153, 1
      %p157 = scmp.eq.s32.totalorder %s23, 7
      %p158 = scmp.ne.s32.totalorder %s153, %s155
      %p159 = scmp.eq.s32.totalorder %s23, 0
      %p160 = por %p158, %p159
      %p161 = scmp.ne.s32.totalorder %s153, %s155
      %p162 = scmp.eq.s32.totalorder %s28, 7
      %p163 = por %p161, %p162
      %p164 = scmp.ne.s32.totalorder %s155, %s156
      %p165 = scmp.eq.s32.totalorder %s28, 0
      %p166 = por %p164, %p165
      %p167 = scmp.ne.s32.totalorder %s155, %s156
      %p168 = scmp.eq.s32.totalorder %s29, 7
      %p169 = por %p167, %p168
      %p171 = scmp.ne.s32.totalorder %s156, %s170
      %p172 = scmp.eq.s32.totalorder %s29, 0
      %p173 = por %p171, %p172
      %s175 = sadd.s32 %s174, 1
      %p178 = scmp.eq.s32.totalorder %s23, 7
      %p179 = scmp.ne.s32.totalorder %s174, %s176
      %p180 = scmp.eq.s32.totalorder %s23, 0
      %p181 = por %p179, %p180
      %p182 = scmp.ne.s32.totalorder %s174, %s176
      %p183 = scmp.eq.s32.totalorder %s28, 7
      %p184 = por %p182, %p183
      %p185 = scmp.ne.s32.totalorder %s176, %s177
      %p186 = scmp.eq.s32.totalorder %s28, 0
      %p187 = por %p185, %p186
      %p188 = scmp.ne.s32.totalorder %s176, %s177
      %p189 = scmp.eq.s32.totalorder %s29, 7
      %p190 = por %p188, %p189
      %p192 = scmp.ne.s32.totalorder %s177, %s191
      %p193 = scmp.eq.s32.totalorder %s29, 0
      %p194 = por %p192, %p193
      %s196 = sadd.s32 %s195, 1
      %p199 = scmp.eq.s32.totalorder %s23, 7
      %p200 = scmp.ne.s32.totalorder %s195, %s197
      %p201 = scmp.eq.s32.totalorder %s23, 0
      %p202 = por %p200, %p201
      %p203 = scmp.ne.s32.totalorder %s195, %s197
      %p204 = scmp.eq.s32.totalorder %s28, 7
      %p205 = por %p203, %p204
      %p206 = scmp.ne.s32.totalorder %s197, %s198
      %p207 = scmp.eq.s32.totalorder %s28, 0
      %p208 = por %p206, %p207
      %p209 = scmp.ne.s32.totalorder %s197, %s198
      %p210 = scmp.eq.s32.totalorder %s29, 7
      %p211 = por %p209, %p210
      %p213 = scmp.ne.s32.totalorder %s198, %s212
      %p214 = scmp.eq.s32.totalorder %s29, 0
      %p215 = por %p213, %p214
      %s217 = sadd.s32 %s216, 1
      %p220 = scmp.eq.s32.totalorder %s23, 7
      %p221 = scmp.ne.s32.totalorder %s216, %s218
      %p222 = scmp.eq.s32.totalorder %s23, 0
      %p223 = por %p221, %p222
      %p224 = scmp.ne.s32.totalorder %s216, %s218
      %p225 = scmp.eq.s32.totalorder %s28, 7
      %p226 = por %p224, %p225
      %p227 = scmp.ne.s32.totalorder %s218, %s219
      %p228 = scmp.eq.s32.totalorder %s28, 0
      %p229 = por %p227, %p228
      %p230 = scmp.ne.s32.totalorder %s218, %s219
      %p231 = scmp.eq.s32.totalorder %s29, 7
      %p232 = por %p230, %p231
      %p234 = scmp.ne.s32.totalorder %s219, %s233
      %p235 = scmp.eq.s32.totalorder %s29, 0
      %p236 = por %p234, %p235
      %s237 = ssub.s32 %s30, %s42
      %s238 = ssub.s32 %s31, %s38
      %s239 = sor.u32 %s237, %s238
      %p240 = scmp.eq.s32.totalorder %s239, 0
      %s242 = sadd.s32 %s241, 1
      %s243 = scalar_select %p240, %s241, %s242
      %p246 = pneg %p240
      %p247 = scmp.eq.s32.totalorder %s23, 7
      %p248 = por %p246, %p247
      %p249 = scmp.ne.s32.totalorder %s241, %s244
      %p250 = scmp.eq.s32.totalorder %s23, 0
      %p251 = por %p249, %p250
      %p252 = scmp.ne.s32.totalorder %s241, %s244
      %p253 = scmp.eq.s32.totalorder %s28, 7
      %p254 = por %p252, %p253
      %p255 = scmp.ne.s32.totalorder %s244, %s245
      %p256 = scmp.eq.s32.totalorder %s28, 0
      %p257 = por %p255, %p256
      %p258 = scmp.ne.s32.totalorder %s244, %s245
      %p259 = scmp.eq.s32.totalorder %s29, 7
      %p260 = por %p258, %p259
      %p262 = scmp.ne.s32.totalorder %s245, %s261
      %p263 = scmp.eq.s32.totalorder %s29, 0
      %p264 = por %p262, %p263
      %s265 = ssub.s32 %s30, %s42
      %s266 = ssub.s32 %s31, %s38
      %s267 = sor.u32 %s265, %s266
      %p268 = scmp.eq.s32.totalorder %s267, 0
      %s270 = sadd.s32 %s269, 1
      %s271 = scalar_select %p268, %s269, %s270
      %p274 = pneg %p268
      %p275 = scmp.eq.s32.totalorder %s23, 7
      %p276 = por %p274, %p275
      %p277 = scmp.ne.s32.totalorder %s269, %s272
      %p278 = scmp.eq.s32.totalorder %s23, 0
      %p279 = por %p277, %p278
      %p280 = scmp.ne.s32.totalorder %s269, %s272
      %p281 = scmp.eq.s32.totalorder %s28, 7
      %p282 = por %p280, %p281
      %p283 = scmp.ne.s32.totalorder %s272, %s273
      %p284 = scmp.eq.s32.totalorder %s28, 0
      %p285 = por %p283, %p284
      %p286 = scmp.ne.s32.totalorder %s272, %s273
      %p287 = scmp.eq.s32.totalorder %s29, 7
      %p288 = por %p286, %p287
      %p290 = scmp.ne.s32.totalorder %s273, %s289
      %p291 = scmp.eq.s32.totalorder %s29, 0
      %p292 = por %p290, %p291
      %p293 = scmp.le.s32.totalorder 1, %s23
      %p294 = scmp.lt.s32.totalorder %s23, 9
      %p295 = pnand %p293, %p294
      %p296 = pneg %p295
      // Predicated region
      $region9: #{tpu_custom_call.1} parent=5 // pred_check
        _
      $region10: #{tpu_custom_call.1} parent=5 // pred_check_branch
        %298 = sbr.rel (%p295) target = $region12
      $region11: #{tpu_custom_call.1} parent=5 // pred_region
        %s299 = ssub.s32 %s23, 1
        // Predicated region
        $region13: #{tpu_custom_call.1} parent=11 // pred_check
          %p300 = pneg %p82
        $region14: #{tpu_custom_call.1} parent=11 // pred_check_branch
          %302 = sbr.rel (%p300) target = $region16
        $region15: #{tpu_custom_call.1} parent=11 // pred_region
          _
        $region16: #{tpu_custom_call.1} parent=11 // pred_fallthru
          _
        // Predicated region
        $region17: #{tpu_custom_call.1} parent=11 // pred_check
          %p303 = pneg %p103
        $region18: #{tpu_custom_call.1} parent=11 // pred_check_branch
          %305 = sbr.rel (%p303) target = $region20
        $region19: #{tpu_custom_call.1} parent=11 // pred_region
          _
        $region20: #{tpu_custom_call.1} parent=11 // pred_fallthru
          _
        // Predicated region
        $region21: #{tpu_custom_call.1} parent=11 // pred_check
          %p306 = pneg %p124
        $region22: #{tpu_custom_call.1} parent=11 // pred_check_branch
          %308 = sbr.rel (%p306) target = $region24
        $region23: #{tpu_custom_call.1} parent=11 // pred_region
          _
        $region24: #{tpu_custom_call.1} parent=11 // pred_fallthru
          _
        // Predicated region
        $region25: #{tpu_custom_call.1} parent=11 // pred_check
          %p309 = pneg %p145
        $region26: #{tpu_custom_call.1} parent=11 // pred_check_branch
          %311 = sbr.rel (%p309) target = $region28
        $region27: #{tpu_custom_call.1} parent=11 // pred_region
          _
        $region28: #{tpu_custom_call.1} parent=11 // pred_fallthru
          _
        // Predicated region
        $region29: #{tpu_custom_call.1} parent=11 // pred_check
          %p312 = pneg %p166
        $region30: #{tpu_custom_call.1} parent=11 // pred_check_branch
          %314 = sbr.rel (%p312) target = $region32
        $region31: #{tpu_custom_call.1} parent=11 // pred_region
          _
        $region32: #{tpu_custom_call.1} parent=11 // pred_fallthru
          _
        // Predicated region
        $region33: #{tpu_custom_call.1} parent=11 // pred_check
          %p315 = pneg %p187
        $region34: #{tpu_custom_call.1} parent=11 // pred_check_branch
          %317 = sbr.rel (%p315) target = $region36
        $region35: #{tpu_custom_call.1} parent=11 // pred_region
          _
        $region36: #{tpu_custom_call.1} parent=11 // pred_fallthru
          _
        // Predicated region
        $region37: #{tpu_custom_call.1} parent=11 // pred_check
          %p318 = pneg %p208
        $region38: #{tpu_custom_call.1} parent=11 // pred_check_branch
          %320 = sbr.rel (%p318) target = $region40
        $region39: #{tpu_custom_call.1} parent=11 // pred_region
          _
        $region40: #{tpu_custom_call.1} parent=11 // pred_fallthru
          _
        // Predicated region
        $region41: #{tpu_custom_call.1} parent=11 // pred_check
          %p321 = pneg %p229
        $region42: #{tpu_custom_call.1} parent=11 // pred_check_branch
          %323 = sbr.rel (%p321) target = $region44
        $region43: #{tpu_custom_call.1} parent=11 // pred_region
          _
        $region44: #{tpu_custom_call.1} parent=11 // pred_fallthru
          _
      $region12: #{tpu_custom_call.1} parent=5 // pred_fallthru
        _
      %p324 = scmp.lt.s32.totalorder %s23, 8
      // Predicated region
      $region45: #{tpu_custom_call.1} parent=5 // pred_check
        %p325 = pneg %p324
      $region46: #{tpu_custom_call.1} parent=5 // pred_check_branch
        %327 = sbr.rel (%p325) target = $region48
      $region47: #{tpu_custom_call.1} parent=5 // pred_region
        // Predicated region
        $region49: #{tpu_custom_call.1} parent=47 // pred_check
          %p328 = pneg %p55
        $region50: #{tpu_custom_call.1} parent=47 // pred_check_branch
          %330 = sbr.rel (%p328) target = $region52
        $region51: #{tpu_custom_call.1} parent=47 // pred_region
          %p331 = scmp.lt.s32.totalorder %s30, 1
          %s332 = scalar_select %p331, %s30, 1
          %s333 = smul.addr %s332, 32
          %s334 = smul.addr %s333, 4
          %s335 = scalar_lea.vmem %s0, %s334
        $region52: #{tpu_custom_call.1} parent=47 // pred_fallthru
          _
      $region48: #{tpu_custom_call.1} parent=5 // pred_fallthru
        _
      %p336 = scmp.le.s32.totalorder 1, %s23
      %p337 = scmp.lt.s32.totalorder %s23, 9
      %p338 = pnand %p336, %p337
      %p339 = pneg %p338
      // Predicated region
      $region53: #{tpu_custom_call.1} parent=5 // pred_check
        _
      $region54: #{tpu_custom_call.1} parent=5 // pred_check_branch
        %341 = sbr.rel (%p338) target = $region56
      $region55: #{tpu_custom_call.1} parent=5 // pred_region
        %s342 = ssub.s32 %s23, 1
        %p343 = scmp.lt.s32.totalorder %s32, 1
        %s344 = scalar_select %p343, %s32, 1
        %s345 = smul.addr %s344, 32
        %s346 = smul.addr %s345, 4
        %s347 = scalar_lea.vmem %s0, %s346
        %p348 = pneg %p61
        %p349 = pneg %p58
        %p350 = pneg %p82
        %p351 = pneg %p79
        %p352 = pneg %p103
        %p353 = pneg %p100
        %p354 = pneg %p124
        %p355 = pneg %p121
        %p356 = pneg %p145
        %p357 = pneg %p142
        %p358 = pneg %p166
        %p359 = pneg %p163
        %p360 = pneg %p187
        %p361 = pneg %p184
        %p362 = pneg %p208
        %p363 = pneg %p205
        %p364 = pneg %p229
        %p365 = pneg %p226
        %p366 = pneg %p257
        %p367 = pneg %p254
        %s368 = sand.u32 %s244, 1
        %s369 = scalar_lea.sflag [#allocation4], %s368
        %s370 = sand.u32 %s244, 1
        %s371 = smul.addr %s370, 64
        %s372 = scalar_lea.vmem [#allocation3], %s371
        %p373 = pneg %p285
        %p374 = pneg %p282
        %s375 = sand.u32 %s272, 1
        %s376 = scalar_lea.sflag [#allocation6], %s375
        %s377 = sand.u32 %s272, 1
        %s378 = smul.addr %s377, 64
        %s379 = scalar_lea.vmem [#allocation5], %s378
        %p380 = scmp.lt.s32.totalorder %s32, 1
        %s381 = scalar_select %p380, %s32, 1
        %s382 = smul.addr %s381, 32
        %s383 = smul.addr %s382, 4
        %s384 = scalar_lea.vmem %s0, %s383
        %s385 = smul.u32 4, %s33
        %s386 = smul.u32 4, %s33
        %s388 = smul.u32 %s33, 4
        %v389 = vld [vmem:[%s1] sm:$0x3]
        %v390 = vld [vmem:[%s2] sm:$0x1]
        %vm391 = vcmask 27648
        %392 = vst.msk [vmem:[#allocation2] sm:$0xf] %vm391, 0
        %393 = vst.msk [vmem:[#allocation2 + $0x4] sm:$0xf] %vm391, 0
        %vm394 = vcmask 24576
        %395 = vst.msk [vmem:[#allocation2 + $0x8] sm:$0x1] %vm394, 0
        %396 = vst.msk [vmem:[#allocation2 + $0xc] sm:$0xf] %vm391, 0
        %397 = vst.msk [vmem:[#allocation2 + $0x10] sm:$0xf] %vm391, 0
        %398 = vst.msk [vmem:[#allocation2 + $0x14] sm:$0x1] %vm394, 0
        %399 = vst.msk [vmem:[#allocation2 + $0x18] sm:$0xf] %vm391, 0
        %400 = vst.msk [vmem:[#allocation2 + $0x1c] sm:$0xf] %vm391, 0
        %401 = vst.msk [vmem:[#allocation2 + $0x20] sm:$0x1] %vm394, 0
        %402 = vst.msk [vmem:[#allocation2 + $0x24] sm:$0xf] %vm391, 0
        %403 = vst.msk [vmem:[#allocation2 + $0x28] sm:$0xf] %vm391, 0
        %404 = vst.msk [vmem:[#allocation2 + $0x2c] sm:$0x1] %vm394, 0
        %405 = vst.msk [vmem:[#allocation2 + $0x30] sm:$0xf] %vm391, 0
        %406 = vst.msk [vmem:[#allocation2 + $0x34] sm:$0xf] %vm391, 0
        %407 = vst.msk [vmem:[#allocation2 + $0x38] sm:$0x1] %vm394, 0
        %408 = vst.msk [vmem:[#allocation2 + $0x3c] sm:$0xf] %vm391, 0
        %409 = vst.msk [vmem:[#allocation2 + $0x40] sm:$0xf] %vm391, 0
        %410 = vst.msk [vmem:[#allocation2 + $0x44] sm:$0x1] %vm394, 0
        %s411 = smul.u32 %s388, 2
        %s412 = smul.addr %s411, 4
        %s413 = scalar_lea.vmem %s384, %s412
        %v414 = vld [vmem:[%s413] sm:$0xf]
        %v415 = vld [vmem:[%s413 + $0x4] sm:$0xf]
        %v416 = vld [vmem:[%s413 + $0x8] sm:$0xf]
        %v417 = vld [vmem:[%s413 + $0xc] sm:$0xf]
        %v418 = vld [vmem:[%s413 + $0x10] sm:$0xf]
        %v419 = vld [vmem:[%s413 + $0x14] sm:$0xf]
        %v420 = vld [vmem:[%s413 + $0x18] sm:$0xf]
        %v421 = vld [vmem:[%s413 + $0x1c] sm:$0xf]
        %v423 = vlaneseq
        %v424 = vshrl.u32 %v423, 7
        %v425 = vsub.s32 0, %v424
        %v426 = vrot.slane %v390, %v425
        %v436 = vunpack.c.l.b16 %v414
        %v437 = vunpack.c.l.b16 %v415
        %v438 = vunpack.c.l.b16 %v416
        %v439 = vunpack.c.l.b16 %v417
        %v440 = vunpack.c.l.b16 %v418
        %v441 = vunpack.c.l.b16 %v419
        %v442 = vunpack.c.l.b16 %v420
        %v443 = vunpack.c.l.b16 %v421
        %v444 = vpack.c.b16 %v437, %v436
        %v445 = vpack.c.b16 %v439, %v438
        %v446 = vpack.c.b16 %v441, %v440
        %v447 = vpack.c.b16 %v443, %v442
        %vm448 = vcmask 31744
        %v450 = vsel %vm448, %v444, 0
        %v453 = vsel %vm448, %v445, 0
        %v456 = vsel %vm448, %v446, 0
        %v459 = vsel %vm448, %v447, 0
        %vm461 = vcmask 1041408
        %v463 = vsel %vm461, %v389, 0
        %465 = vmatprep.subr.bf16.mxu0 0
        %466 = vmatpush1.bf16.msra.mxu0 %v463
        %467 = vmatprep.subr.bf16.mxu0 0
        %468 = vmatpush1.bf16.msra.mxu0 0
        %469 = vmatprep.subr.bf16.mxu0 0
        %470 = vmatpush1.bf16.msra.mxu0 0
        %471 = vmatprep.subr.bf16.mxu0 0
        %472 = vmatpush1.bf16.msra.mxu0 0
        %473 = vmatprep.subr.bf16.mxu0 0
        %474 = vmatpush1.bf16.msra.mxu0 0
        %475 = vmatprep.subr.bf16.mxu0 0
        %476 = vmatpush1.bf16.msra.mxu0 0
        %477 = vmatprep.subr.bf16.mxu0 0
        %478 = vmatpush1.bf16.msra.mxu0 0
        %479 = vmatprep.subr.bf16.mxu0 0
        %480 = vmatpush1.bf16.msra.mxu0 0
        %481 = vmatprep.subr.bf16.mxu0 0
        %482 = vmatpush1.bf16.msra.mxu0 0
        %483 = vmatprep.subr.bf16.mxu0 0
        %484 = vmatpush1.bf16.msra.mxu0 0
        %485 = vmatprep.subr.bf16.mxu0 0
        %486 = vmatpush1.bf16.msra.mxu0 0
        %487 = vmatprep.subr.bf16.mxu0 0
        %488 = vmatpush1.bf16.msra.mxu0 0
        %489 = vmatprep.subr.bf16.mxu0 0
        %490 = vmatpush1.bf16.msra.mxu0 0
        %491 = vmatprep.subr.bf16.mxu0 0
        %492 = vmatpush1.bf16.msra.mxu0 0
        %493 = vmatprep.subr.bf16.mxu0 0
        %494 = vmatpush1.bf16.msra.mxu0 0
        %495 = vmatprep.subr.bf16.mxu0 0
        %496 = vmatpush1.bf16.msra.mxu0 0
        %497 = vmatprep.mubr.bf16.mxu0 0
        %498 = vmatmul.mubr.bf16.gmra.mrb[0].mxu0 %v450
        %v499 = vpop.f32.mrb[0].mxu0
        %v500 = vadd.f32 %v426, %v499
        %v501 = vpop.f32.mrb[0].mxu0
        %v502 = vpop.f32.mrb[0].mxu0
        %v503 = vadd.f32 %v426, %v502
        %v504 = vpop.f32.mrb[0].mxu0
        %505 = vmatprep.mubr.bf16.mxu0 0
        %506 = vmatmul.mubr.bf16.gmra.mrb[0].mxu0 %v453
        %v507 = vpop.f32.mrb[0].mxu0
        %v508 = vadd.f32 %v426, %v507
        %v509 = vpop.f32.mrb[0].mxu0
        %v510 = vpop.f32.mrb[0].mxu0
        %v511 = vadd.f32 %v426, %v510
        %v512 = vpop.f32.mrb[0].mxu0
        %513 = vmatprep.mubr.bf16.mxu0 0
        %514 = vmatmul.mubr.bf16.gmra.mrb[0].mxu0 %v456
        %v515 = vpop.f32.mrb[0].mxu0
        %v516 = vadd.f32 %v426, %v515
        %v517 = vpop.f32.mrb[0].mxu0
        %v518 = vpop.f32.mrb[0].mxu0
        %v519 = vadd.f32 %v426, %v518
        %v520 = vpop.f32.mrb[0].mxu0
        %521 = vmatprep.mubr.bf16.mxu0 0
        %522 = vmatmul.mubr.bf16.gmra.mrb[0].mxu0 %v459
        %v523 = vpop.f32.mrb[0].mxu0
        %v524 = vadd.f32 %v426, %v523
        %v525 = vpop.f32.mrb[0].mxu0
        %v526 = vpop.f32.mrb[0].mxu0
        %v527 = vadd.f32 %v426, %v526
        %v528 = vpop.f32.mrb[0].mxu0
        %529 = vdwg.mxu0
        %v530 = vmax.f32 %v500, 0.0
        %v531 = vmax.f32 %v503, 0.0
        %v532 = vmax.f32 %v508, 0.0
        %v533 = vmax.f32 %v511, 0.0
        %v534 = vmax.f32 %v516, 0.0
        %v535 = vmax.f32 %v519, 0.0
        %v536 = vmax.f32 %v524, 0.0
        %v537 = vmax.f32 %v527, 0.0
        %v538 = vpack.c.bf16 %v531, %v530
        %v539 = vpack.c.bf16 %v533, %v532
        %v540 = vpack.c.bf16 %v535, %v534
        %v541 = vpack.c.bf16 %v537, %v536
        %v546 = vunpack.c.l.b16 %v538
        %v547 = vunpack.c.h.b16 %v538
        %v548 = vunpack.c.l.b16 %v539
        %v549 = vunpack.c.h.b16 %v539
        %v550 = vunpack.c.l.b16 %v540
        %v551 = vunpack.c.h.b16 %v540
        %v552 = vunpack.c.l.b16 %v541
        %v553 = vunpack.c.h.b16 %v541
        %v554 = vpack.c.b16 %v546, %v546
        %v555 = vpack.c.b16 %v547, %v547
        %v556 = vpack.c.b16 %v548, %v548
        %v557 = vpack.c.b16 %v549, %v549
        %v558 = vpack.c.b16 %v550, %v550
        %v559 = vpack.c.b16 %v551, %v551
        %v560 = vpack.c.b16 %v552, %v552
        %v561 = vpack.c.b16 %v553, %v553
        %vm562 = vsmask.f32 256
        %vm563 = vsmask.f32 4368
        %vm564 = vmor %vm562, %vm563
        %v566 = vshrl.u32 %v554, 16
        %v568 = vrot.slane %v566, 7
        %v569 = vshll.u32 %v554, 16
        %v571 = vor.u32 %v568, %v569
        %v572 = vrot.slane %v568, 4
        %v574 = vshrl.u32 %v555, 16
        %v576 = vrot.slane %v574, 7
        %v577 = vshll.u32 %v555, 16
        %v579 = vor.u32 %v576, %v577
        %v580 = vsel %vm564, %v572, %v579
        %v581 = vrot.slane %v576, 4
        %v583 = vshrl.u32 %v556, 16
        %v585 = vrot.slane %v583, 7
        %v586 = vshll.u32 %v556, 16
        %v588 = vor.u32 %v585, %v586
        %v589 = vrot.slane %v585, 4
        %v591 = vshrl.u32 %v557, 16
        %v593 = vrot.slane %v591, 7
        %v594 = vshll.u32 %v557, 16
        %v596 = vor.u32 %v593, %v594
        %v597 = vsel %vm564, %v589, %v596
        %v598 = vrot.slane %v593, 4
        %v600 = vshrl.u32 %v558, 16
        %v602 = vrot.slane %v600, 7
        %v603 = vshll.u32 %v558, 16
        %v605 = vor.u32 %v602, %v603
        %v606 = vrot.slane %v602, 4
        %v608 = vshrl.u32 %v559, 16
        %v610 = vrot.slane %v608, 7
        %v611 = vshll.u32 %v559, 16
        %v613 = vor.u32 %v610, %v611
        %v614 = vsel %vm564, %v606, %v613
        %v615 = vrot.slane %v610, 4
        %v617 = vshrl.u32 %v560, 16
        %v619 = vrot.slane %v617, 7
        %v620 = vshll.u32 %v560, 16
        %v622 = vor.u32 %v619, %v620
        %v623 = vrot.slane %v619, 4
        %v625 = vshrl.u32 %v561, 16
        %v627 = vrot.slane %v625, 7
        %v628 = vshll.u32 %v561, 16
        %v630 = vor.u32 %v627, %v628
        %v631 = vsel %vm564, %v623, %v630
        %v632 = vrot.slane %v627, 4
        %s645 = scalar_lea.vmem [#allocation2], 12
        %vm646 = vcmask 27648
        %vm647 = vsmask.f32 7938
        %vm648 = vmand %vm646, %vm647
        %v649 = vld [vmem:[%s645] sm:$0xf]
        %v650 = vsel %vm648, %v571, %v649
        %651 = vst [vmem:[%s645] sm:$0xf] %v650
        %652 = vst.msk [vmem:[%s645 + $0x4] sm:$0xf] %vm391, %v580
        %vm653 = vcmask 24576
        %vm654 = vmand %vm653, %vm562
        %v655 = vld [vmem:[%s645 + $0x8] sm:$0x1]
        %v656 = vsel %vm654, %v581, %v655
        %657 = vst [vmem:[%s645 + $0x8] sm:$0x1] %v656
        %v658 = vld [vmem:[%s645 + $0xc] sm:$0xf]
        %v659 = vsel %vm648, %v588, %v658
        %660 = vst [vmem:[%s645 + $0xc] sm:$0xf] %v659
        %661 = vst.msk [vmem:[%s645 + $0x10] sm:$0xf] %vm391, %v597
        %v662 = vld [vmem:[%s645 + $0x14] sm:$0x1]
        %v663 = vsel %vm654, %v598, %v662
        %664 = vst [vmem:[%s645 + $0x14] sm:$0x1] %v663
        %v665 = vld [vmem:[%s645 + $0x18] sm:$0xf]
        %v666 = vsel %vm648, %v605, %v665
        %667 = vst [vmem:[%s645 + $0x18] sm:$0xf] %v666
        %668 = vst.msk [vmem:[%s645 + $0x1c] sm:$0xf] %vm391, %v614
        %v669 = vld [vmem:[%s645 + $0x20] sm:$0x1]
        %v670 = vsel %vm654, %v615, %v669
        %671 = vst [vmem:[%s645 + $0x20] sm:$0x1] %v670
        %v672 = vld [vmem:[%s645 + $0x24] sm:$0xf]
        %v673 = vsel %vm648, %v622, %v672
        %674 = vst [vmem:[%s645 + $0x24] sm:$0xf] %v673
        %675 = vst.msk [vmem:[%s645 + $0x28] sm:$0xf] %vm391, %v631
        %v676 = vld [vmem:[%s645 + $0x2c] sm:$0x1]
        %v677 = vsel %vm654, %v632, %v676
        %678 = vst [vmem:[%s645 + $0x2c] sm:$0x1] %v677
        %p679 = scmp.gt.s32.totalorder %s388, 0
        // Predicated region
        $region57: #{tpu_custom_call.1} parent=55 // pred_check
          %p680 = pneg %p679
        $region58: #{tpu_custom_call.1} parent=55 // pred_check_branch
          %682 = sbr.rel (%p680) target = $region60
        $region59: #{tpu_custom_call.1} parent=55 // pred_region
          %s683 = ssub.s32 %s388, 1
          %s684 = smul.u32 %s683, 2
          %s685 = smul.addr %s684, 4
          %s686 = scalar_lea.vmem %s384, %s685
          %v687 = vld [vmem:[%s686] sm:$0xf]
          %v688 = vld [vmem:[%s686 + $0x4] sm:$0xf]
          %v691 = vunpack.c.l.b16 %v687
          %v692 = vunpack.c.l.b16 %v688
          %v693 = vpack.c.b16 %v692, %v691
          %v695 = vsel %vm448, %v693, 0
          %697 = vmatprep.subr.bf16.mxu0 0
          %698 = vmatpush1.bf16.msra.mxu0 %v463
          %699 = vmatprep.subr.bf16.mxu0 0
          %700 = vmatpush1.bf16.msra.mxu0 0
          %701 = vmatprep.subr.bf16.mxu0 0
          %702 = vmatpush1.bf16.msra.mxu0 0
          %703 = vmatprep.subr.bf16.mxu0 0
          %704 = vmatpush1.bf16.msra.mxu0 0
          %705 = vmatprep.subr.bf16.mxu0 0
          %706 = vmatpush1.bf16.msra.mxu0 0
          %707 = vmatprep.subr.bf16.mxu0 0
          %708 = vmatpush1.bf16.msra.mxu0 0
          %709 = vmatprep.subr.bf16.mxu0 0
          %710 = vmatpush1.bf16.msra.mxu0 0
          %711 = vmatprep.subr.bf16.mxu0 0
          %712 = vmatpush1.bf16.msra.mxu0 0
          %713 = vmatprep.subr.bf16.mxu0 0
          %714 = vmatpush1.bf16.msra.mxu0 0
          %715 = vmatprep.subr.bf16.mxu0 0
          %716 = vmatpush1.bf16.msra.mxu0 0
          %717 = vmatprep.subr.bf16.mxu0 0
          %718 = vmatpush1.bf16.msra.mxu0 0
          %719 = vmatprep.subr.bf16.mxu0 0
          %720 = vmatpush1.bf16.msra.mxu0 0
          %721 = vmatprep.subr.bf16.mxu0 0
          %722 = vmatpush1.bf16.msra.mxu0 0
          %723 = vmatprep.subr.bf16.mxu0 0
          %724 = vmatpush1.bf16.msra.mxu0 0
          %725 = vmatprep.subr.bf16.mxu0 0
          %726 = vmatpush1.bf16.msra.mxu0 0
          %727 = vmatprep.subr.bf16.mxu0 0
          %728 = vmatpush1.bf16.msra.mxu0 0
          %729 = vmatprep.mubr.bf16.mxu0 0
          %730 = vmatmul.mubr.bf16.gmra.mrb[0].mxu0 %v695
          %v731 = vpop.f32.mrb[0].mxu0
          %v732 = vadd.f32 %v426, %v731
          %v733 = vpop.f32.mrb[0].mxu0
          %v734 = vpop.f32.mrb[0].mxu0
          %v735 = vadd.f32 %v426, %v734
          %v736 = vpop.f32.mrb[0].mxu0
          %737 = vdwg.mxu0
          %v738 = vmax.f32 %v732, 0.0
          %v739 = vmax.f32 %v735, 0.0
          %v740 = vpack.c.bf16 %v739, %v738
          %v742 = vunpack.c.l.b16 %v740
          %v743 = vunpack.c.h.b16 %v740
          %v744 = vpack.c.b16 %v742, %v742
          %v745 = vpack.c.b16 %v743, %v743
          %v747 = vshrl.u32 %v744, 16
          %v749 = vrot.slane %v747, 7
          %v750 = vshll.u32 %v744, 16
          %v752 = vor.u32 %v749, %v750
          %v753 = vrot.slane %v749, 4
          %v755 = vshrl.u32 %v745, 16
          %v757 = vrot.slane %v755, 7
          %v758 = vshll.u32 %v745, 16
          %v760 = vor.u32 %v757, %v758
          %v761 = vsel %vm564, %v753, %v760
          %v762 = vrot.slane %v757, 4
          %v766 = vld [vmem:[#allocation2] sm:$0xf]
          %v767 = vsel %vm648, %v752, %v766
          %768 = vst [vmem:[#allocation2] sm:$0xf] %v767
          %769 = vst.msk [vmem:[#allocation2 + $0x4] sm:$0xf] %vm391, %v761
          %v770 = vld [vmem:[#allocation2 + $0x8] sm:$0x1]
          %v771 = vsel %vm654, %v762, %v770
          %772 = vst [vmem:[#allocation2 + $0x8] sm:$0x1] %v771
        $region60: #{tpu_custom_call.1} parent=55 // pred_fallthru
          _
        %s773 = sadd.s32 %s388, 4
        %p774 = scmp.lt.s32.totalorder %s773, 16
        // Predicated region
        $region61: #{tpu_custom_call.1} parent=55 // pred_check
          %p775 = pneg %p774
        $region62: #{tpu_custom_call.1} parent=55 // pred_check_branch
          %777 = sbr.rel (%p775) target = $region64
        $region63: #{tpu_custom_call.1} parent=55 // pred_region
          %s778 = smul.u32 %s773, 2
          %s779 = smul.addr %s778, 4
          %s780 = scalar_lea.vmem %s384, %s779
          %v781 = vld [vmem:[%s780] sm:$0xf]
          %v782 = vld [vmem:[%s780 + $0x4] sm:$0xf]
          %v785 = vunpack.c.l.b16 %v781
          %v786 = vunpack.c.l.b16 %v782
          %v787 = vpack.c.b16 %v786, %v785
          %v789 = vsel %vm448, %v787, 0
          %791 = vmatprep.subr.bf16.mxu0 0
          %792 = vmatpush1.bf16.msra.mxu0 %v463
          %793 = vmatprep.subr.bf16.mxu0 0
          %794 = vmatpush1.bf16.msra.mxu0 0
          %795 = vmatprep.subr.bf16.mxu0 0
          %796 = vmatpush1.bf16.msra.mxu0 0
          %797 = vmatprep.subr.bf16.mxu0 0
          %798 = vmatpush1.bf16.msra.mxu0 0
          %799 = vmatprep.subr.bf16.mxu0 0
          %800 = vmatpush1.bf16.msra.mxu0 0
          %801 = vmatprep.subr.bf16.mxu0 0
          %802 = vmatpush1.bf16.msra.mxu0 0
          %803 = vmatprep.subr.bf16.mxu0 0
          %804 = vmatpush1.bf16.msra.mxu0 0
          %805 = vmatprep.subr.bf16.mxu0 0
          %806 = vmatpush1.bf16.msra.mxu0 0
          %807 = vmatprep.subr.bf16.mxu0 0
          %808 = vmatpush1.bf16.msra.mxu0 0
          %809 = vmatprep.subr.bf16.mxu0 0
          %810 = vmatpush1.bf16.msra.mxu0 0
          %811 = vmatprep.subr.bf16.mxu0 0
          %812 = vmatpush1.bf16.msra.mxu0 0
          %813 = vmatprep.subr.bf16.mxu0 0
          %814 = vmatpush1.bf16.msra.mxu0 0
          %815 = vmatprep.subr.bf16.mxu0 0
          %816 = vmatpush1.bf16.msra.mxu0 0
          %817 = vmatprep.subr.bf16.mxu0 0
          %818 = vmatpush1.bf16.msra.mxu0 0
          %819 = vmatprep.subr.bf16.mxu0 0
          %820 = vmatpush1.bf16.msra.mxu0 0
          %821 = vmatprep.subr.bf16.mxu0 0
          %822 = vmatpush1.bf16.msra.mxu0 0
          %823 = vmatprep.mubr.bf16.mxu0 0
          %824 = vmatmul.mubr.bf16.gmra.mrb[0].mxu0 %v789
          %v825 = vpop.f32.mrb[0].mxu0
          %v826 = vadd.f32 %v426, %v825
          %v827 = vpop.f32.mrb[0].mxu0
          %v828 = vpop.f32.mrb[0].mxu0
          %v829 = vadd.f32 %v426, %v828
          %v830 = vpop.f32.mrb[0].mxu0
          %831 = vdwg.mxu0
          %v832 = vmax.f32 %v826, 0.0
          %v833 = vmax.f32 %v829, 0.0
          %v834 = vpack.c.bf16 %v833, %v832
          %v836 = vunpack.c.l.b16 %v834
          %v837 = vunpack.c.h.b16 %v834
          %v838 = vpack.c.b16 %v836, %v836
          %v839 = vpack.c.b16 %v837, %v837
          %v841 = vshrl.u32 %v838, 16
          %v843 = vrot.slane %v841, 7
          %v844 = vshll.u32 %v838, 16
          %v846 = vor.u32 %v843, %v844
          %v847 = vrot.slane %v843, 4
          %v849 = vshrl.u32 %v839, 16
          %v851 = vrot.slane %v849, 7
          %v852 = vshll.u32 %v839, 16
          %v854 = vor.u32 %v851, %v852
          %v855 = vsel %vm564, %v847, %v854
          %v856 = vrot.slane %v851, 4
          %s860 = scalar_lea.vmem [#allocation2], 60
          %v861 = vld [vmem:[%s860] sm:$0xf]
          %v862 = vsel %vm648, %v846, %v861
          %863 = vst [vmem:[%s860] sm:$0xf] %v862
          %864 = vst.msk [vmem:[%s860 + $0x4] sm:$0xf] %vm391, %v855
          %v865 = vld [vmem:[%s860 + $0x8] sm:$0x1]
          %v866 = vsel %vm654, %v856, %v865
          %867 = vst [vmem:[%s860 + $0x8] sm:$0x1] %v866
        $region64: #{tpu_custom_call.1} parent=55 // pred_fallthru
          _
        %v868 = vld [vmem:[#allocation2] sm:$0xf]
        %v869 = vld [vmem:[#allocation2 + $0x4] sm:$0xf]
        %v870 = vld [vmem:[#allocation2 + $0xc] sm:$0xf]
        %v871 = vld [vmem:[#allocation2 + $0x10] sm:$0xf]
        %v872 = vld [vmem:[#allocation2 + $0x18] sm:$0xf]
        %v873 = vld [vmem:[#allocation2 + $0x1c] sm:$0xf]
        %v874 = vld [vmem:[#allocation2 + $0x24] sm:$0xf]
        %v875 = vld [vmem:[#allocation2 + $0x28] sm:$0xf]
        %v876 = vld [vmem:[%s3] sm:$0x3]
        %v877 = vld [vmem:[#allocation2 + $0x8] sm:$0x1]
        %v878 = vld [vmem:[#allocation2 + $0x14] sm:$0x1]
        %v879 = vld [vmem:[#allocation2 + $0x20] sm:$0x1]
        %v880 = vld [vmem:[#allocation2 + $0x2c] sm:$0x1]
        %vm881 = vsmask.f32 3328
        %vm882 = vsmask.f32 7440
        %vm883 = vmor %vm881, %vm882
        %v885 = vshrl.u32 %v868, 16
        %v887 = vrot.slane %v885, 4
        %v888 = vshll.u32 %v868, 16
        %v890 = vrot.slane %v888, 5
        %v891 = vor.u32 %v887, %v890
        %v892 = vrot.slane %v891, 4
        %v894 = vshll.u32 %v869, 16
        %v896 = vrot.slane %v894, 5
        %v897 = vsel %vm883, %v892, %v896
        %v898 = vshrl.u32 %v869, 16
        %v900 = vrot.slane %v898, 4
        %v901 = vor.u32 %v900, %v896
        %v902 = vrot.slane %v901, 4
        %v904 = vshll.u32 %v877, 16
        %v906 = vrot.slane %v904, 5
        %v907 = vsel %vm883, %v902, %v906
        %v909 = vshrl.u32 %v870, 16
        %v911 = vrot.slane %v909, 4
        %v912 = vshll.u32 %v870, 16
        %v914 = vrot.slane %v912, 5
        %v915 = vor.u32 %v911, %v914
        %v916 = vrot.slane %v915, 4
        %v918 = vshll.u32 %v871, 16
        %v920 = vrot.slane %v918, 5
        %v921 = vsel %vm883, %v916, %v920
        %v922 = vshrl.u32 %v871, 16
        %v924 = vrot.slane %v922, 4
        %v925 = vor.u32 %v924, %v920
        %v926 = vrot.slane %v925, 4
        %v928 = vshll.u32 %v878, 16
        %v930 = vrot.slane %v928, 5
        %v931 = vsel %vm883, %v926, %v930
        %v933 = vshrl.u32 %v872, 16
        %v935 = vrot.slane %v933, 4
        %v936 = vshll.u32 %v872, 16
        %v938 = vrot.slane %v936, 5
        %v939 = vor.u32 %v935, %v938
        %v940 = vrot.slane %v939, 4
        %v942 = vshll.u32 %v873, 16
        %v944 = vrot.slane %v942, 5
        %v945 = vsel %vm883, %v940, %v944
        %v946 = vshrl.u32 %v873, 16
        %v948 = vrot.slane %v946, 4
        %v949 = vor.u32 %v948, %v944
        %v950 = vrot.slane %v949, 4
        %v952 = vshll.u32 %v879, 16
        %v954 = vrot.slane %v952, 5
        %v955 = vsel %vm883, %v950, %v954
        %v957 = vshrl.u32 %v874, 16
        %v959 = vrot.slane %v957, 4
        %v960 = vshll.u32 %v874, 16
        %v962 = vrot.slane %v960, 5
        %v963 = vor.u32 %v959, %v962
        %v964 = vrot.slane %v963, 4
        %v966 = vshll.u32 %v875, 16
        %v968 = vrot.slane %v966, 5
        %v969 = vsel %vm883, %v964, %v968
        %v970 = vshrl.u32 %v875, 16
        %v972 = vrot.slane %v970, 4
        %v973 = vor.u32 %v972, %v968
        %v974 = vrot.slane %v973, 4
        %v976 = vshll.u32 %v880, 16
        %v978 = vrot.slane %v976, 5
        %v979 = vsel %vm883, %v974, %v978
        %s980 = scalar_lea.vmem %s3, 2
        %v981 = vld [vmem:[%s980] sm:$0x3]
        %v982 = vunpack.c.l.b16 %v897
        %v983 = vunpack.c.l.b16 %v907
        %v984 = vunpack.c.l.b16 %v921
        %v985 = vunpack.c.l.b16 %v931
        %v986 = vunpack.c.l.b16 %v945
        %v987 = vunpack.c.l.b16 %v955
        %v988 = vunpack.c.l.b16 %v969
        %v989 = vunpack.c.l.b16 %v979
        %v990 = vpack.c.b16 %v983, %v982
        %v991 = vpack.c.b16 %v985, %v984
        %v992 = vpack.c.b16 %v987, %v986
        %v993 = vpack.c.b16 %v989, %v988
        %v995 = vsel %vm448, %v990, 0
        %v998 = vsel %vm448, %v991, 0
        %v1001 = vsel %vm448, %v992, 0
        %v1004 = vsel %vm448, %v993, 0
        %v1007 = vsel %vm461, %v981, 0
        %1009 = vmatprep.subr.bf16.mxu0 0
        %1010 = vmatpush1.bf16.msra.mxu0 %v1007
        %1011 = vmatprep.subr.bf16.mxu0 0
        %1012 = vmatpush1.bf16.msra.mxu0 0
        %1013 = vmatprep.subr.bf16.mxu0 0
        %1014 = vmatpush1.bf16.msra.mxu0 0
        %1015 = vmatprep.subr.bf16.mxu0 0
        %1016 = vmatpush1.bf16.msra.mxu0 0
        %1017 = vmatprep.subr.bf16.mxu0 0
        %1018 = vmatpush1.bf16.msra.mxu0 0
        %1019 = vmatprep.subr.bf16.mxu0 0
        %1020 = vmatpush1.bf16.msra.mxu0 0
        %1021 = vmatprep.subr.bf16.mxu0 0
        %1022 = vmatpush1.bf16.msra.mxu0 0
        %1023 = vmatprep.subr.bf16.mxu0 0
        %1024 = vmatpush1.bf16.msra.mxu0 0
        %1025 = vmatprep.subr.bf16.mxu0 0
        %1026 = vmatpush1.bf16.msra.mxu0 0
        %1027 = vmatprep.subr.bf16.mxu0 0
        %1028 = vmatpush1.bf16.msra.mxu0 0
        %1029 = vmatprep.subr.bf16.mxu0 0
        %1030 = vmatpush1.bf16.msra.mxu0 0
        %1031 = vmatprep.subr.bf16.mxu0 0
        %1032 = vmatpush1.bf16.msra.mxu0 0
        %1033 = vmatprep.subr.bf16.mxu0 0
        %1034 = vmatpush1.bf16.msra.mxu0 0
        %1035 = vmatprep.subr.bf16.mxu0 0
        %1036 = vmatpush1.bf16.msra.mxu0 0
        %1037 = vmatprep.subr.bf16.mxu0 0
        %1038 = vmatpush1.bf16.msra.mxu0 0
        %1039 = vmatprep.subr.bf16.mxu0 0
        %1040 = vmatpush1.bf16.msra.mxu0 0
        %1041 = vmatprep.mubr.bf16.mxu0 0
        %1042 = vmatmul.mubr.bf16.gmra.mrb[0].mxu0 %v995
        %v1043 = vpop.f32.mrb[0].mxu0
        %v1044 = vadd.f32 0.0, %v1043
        %v1045 = vpop.f32.mrb[0].mxu0
        %v1046 = vpop.f32.mrb[0].mxu0
        %v1047 = vadd.f32 0.0, %v1046
        %v1048 = vpop.f32.mrb[0].mxu0
        %1049 = vmatprep.mubr.bf16.mxu0 0
        %1050 = vmatmul.mubr.bf16.gmra.mrb[0].mxu0 %v998
        %v1051 = vpop.f32.mrb[0].mxu0
        %v1052 = vadd.f32 0.0, %v1051
        %v1053 = vpop.f32.mrb[0].mxu0
        %v1054 = vpop.f32.mrb[0].mxu0
        %v1055 = vadd.f32 0.0, %v1054
        %v1056 = vpop.f32.mrb[0].mxu0
        %1057 = vmatprep.mubr.bf16.mxu0 0
        %1058 = vmatmul.mubr.bf16.gmra.mrb[0].mxu0 %v1001
        %v1059 = vpop.f32.mrb[0].mxu0
        %v1060 = vadd.f32 0.0, %v1059
        %v1061 = vpop.f32.mrb[0].mxu0
        %v1062 = vpop.f32.mrb[0].mxu0
        %v1063 = vadd.f32 0.0, %v1062
        %v1064 = vpop.f32.mrb[0].mxu0
        %1065 = vmatprep.mubr.bf16.mxu0 0
        %1066 = vmatmul.mubr.bf16.gmra.mrb[0].mxu0 %v1004
        %v1067 = vpop.f32.mrb[0].mxu0
        %v1068 = vadd.f32 0.0, %v1067
        %v1069 = vpop.f32.mrb[0].mxu0
        %v1070 = vpop.f32.mrb[0].mxu0
        %v1071 = vadd.f32 0.0, %v1070
        %v1072 = vpop.f32.mrb[0].mxu0
        %1073 = vdwg.mxu0
        %v1082 = vunpack.c.l.b16 %v868
        %v1083 = vunpack.c.l.b16 %v869
        %v1084 = vunpack.c.l.b16 %v870
        %v1085 = vunpack.c.l.b16 %v871
        %v1086 = vunpack.c.l.b16 %v872
        %v1087 = vunpack.c.l.b16 %v873
        %v1088 = vunpack.c.l.b16 %v874
        %v1089 = vunpack.c.l.b16 %v875
        %v1090 = vpack.c.b16 %v1083, %v1082
        %v1091 = vpack.c.b16 %v1085, %v1084
        %v1092 = vpack.c.b16 %v1087, %v1086
        %v1093 = vpack.c.b16 %v1089, %v1088
        %v1095 = vsel %vm448, %v1090, 0
        %v1098 = vsel %vm448, %v1091, 0
        %v1101 = vsel %vm448, %v1092, 0
        %v1104 = vsel %vm448, %v1093, 0
        %v1107 = vsel %vm461, %v876, 0
        %1109 = vmatprep.subr.bf16.mxu0 0
        %1110 = vmatpush1.bf16.msra.mxu0 %v1107
        %1111 = vmatprep.subr.bf16.mxu0 0
        %1112 = vmatpush1.bf16.msra.mxu0 0
        %1113 = vmatprep.subr.bf16.mxu0 0
        %1114 = vmatpush1.bf16.msra.mxu0 0
        %1115 = vmatprep.subr.bf16.mxu0 0
        %1116 = vmatpush1.bf16.msra.mxu0 0
        %1117 = vmatprep.subr.bf16.mxu0 0
        %1118 = vmatpush1.bf16.msra.mxu0 0
        %1119 = vmatprep.subr.bf16.mxu0 0
        %1120 = vmatpush1.bf16.msra.mxu0 0
        %1121 = vmatprep.subr.bf16.mxu0 0
        %1122 = vmatpush1.bf16.msra.mxu0 0
        %1123 = vmatprep.subr.bf16.mxu0 0
        %1124 = vmatpush1.bf16.msra.mxu0 0
        %1125 = vmatprep.subr.bf16.mxu0 0
        %1126 = vmatpush1.bf16.msra.mxu0 0
        %1127 = vmatprep.subr.bf16.mxu0 0
        %1128 = vmatpush1.bf16.msra.mxu0 0
        %1129 = vmatprep.subr.bf16.mxu0 0
        %1130 = vmatpush1.bf16.msra.mxu0 0
        %1131 = vmatprep.subr.bf16.mxu0 0
        %1132 = vmatpush1.bf16.msra.mxu0 0
        %1133 = vmatprep.subr.bf16.mxu0 0
        %1134 = vmatpush1.bf16.msra.mxu0 0
        %1135 = vmatprep.subr.bf16.mxu0 0
        %1136 = vmatpush1.bf16.msra.mxu0 0
        %1137 = vmatprep.subr.bf16.mxu0 0
        %1138 = vmatpush1.bf16.msra.mxu0 0
        %1139 = vmatprep.subr.bf16.mxu0 0
        %1140 = vmatpush1.bf16.msra.mxu0 0
        %1141 = vmatprep.mubr.bf16.mxu0 0
        %1142 = vmatmul.mubr.bf16.gmra.mrb[0].mxu0 %v1095
        %v1143 = vpop.f32.mrb[0].mxu0
        %v1144 = vadd.f32 %v1044, %v1143
        %v1145 = vpop.f32.mrb[0].mxu0
        %v1146 = vpop.f32.mrb[0].mxu0
        %v1147 = vadd.f32 %v1047, %v1146
        %v1148 = vpop.f32.mrb[0].mxu0
        %1149 = vmatprep.mubr.bf16.mxu0 0
        %1150 = vmatmul.mubr.bf16.gmra.mrb[0].mxu0 %v1098
        %v1151 = vpop.f32.mrb[0].mxu0
        %v1152 = vadd.f32 %v1052, %v1151
        %v1153 = vpop.f32.mrb[0].mxu0
        %v1154 = vpop.f32.mrb[0].mxu0
        %v1155 = vadd.f32 %v1055, %v1154
        %v1156 = vpop.f32.mrb[0].mxu0
        %1157 = vmatprep.mubr.bf16.mxu0 0
        %1158 = vmatmul.mubr.bf16.gmra.mrb[0].mxu0 %v1101
        %v1159 = vpop.f32.mrb[0].mxu0
        %v1160 = vadd.f32 %v1060, %v1159
        %v1161 = vpop.f32.mrb[0].mxu0
        %v1162 = vpop.f32.mrb[0].mxu0
        %v1163 = vadd.f32 %v1063, %v1162
        %v1164 = vpop.f32.mrb[0].mxu0
        %1165 = vmatprep.mubr.bf16.mxu0 0
        %1166 = vmatmul.mubr.bf16.gmra.mrb[0].mxu0 %v1104
        %v1167 = vpop.f32.mrb[0].mxu0
        %v1168 = vadd.f32 %v1068, %v1167
        %v1169 = vpop.f32.mrb[0].mxu0
        %v1170 = vpop.f32.mrb[0].mxu0
        %v1171 = vadd.f32 %v1071, %v1170
        %v1172 = vpop.f32.mrb[0].mxu0
        %1173 = vdwg.mxu0
        %v1174 = vld [vmem:[#allocation2] sm:$0xe]
        %v1175 = vld [vmem:[#allocation2 + $0xc] sm:$0xe]
        %v1176 = vld [vmem:[#allocation2 + $0x18] sm:$0xe]
        %v1177 = vld [vmem:[#allocation2 + $0x24] sm:$0xe]
        %vm1186 = vcmask 1042432
        %vm1187 = vcmask 1046532
        %vm1188 = vmor %vm1186, %vm1187
        %v1189 = vrot.slane %v1174, 5
        %v1190 = vrot.slane %v1189, 4
        %v1191 = vrot.slane %v869, 5
        %v1192 = vsel %vm1188, %v1190, %v1191
        %v1193 = vrot.slane %v1191, 4
        %v1194 = vrot.slane %v877, 5
        %v1195 = vsel %vm1188, %v1193, %v1194
        %v1196 = vrot.slane %v1175, 5
        %v1197 = vrot.slane %v1196, 4
        %v1198 = vrot.slane %v871, 5
        %v1199 = vsel %vm1188, %v1197, %v1198
        %v1200 = vrot.slane %v1198, 4
        %v1201 = vrot.slane %v878, 5
        %v1202 = vsel %vm1188, %v1200, %v1201
        %v1203 = vrot.slane %v1176, 5
        %v1204 = vrot.slane %v1203, 4
        %v1205 = vrot.slane %v873, 5
        %v1206 = vsel %vm1188, %v1204, %v1205
        %v1207 = vrot.slane %v1205, 4
        %v1208 = vrot.slane %v879, 5
        %v1209 = vsel %vm1188, %v1207, %v1208
        %v1210 = vrot.slane %v1177, 5
        %v1211 = vrot.slane %v1210, 4
        %v1212 = vrot.slane %v875, 5
        %v1213 = vsel %vm1188, %v1211, %v1212
        %v1214 = vrot.slane %v1212, 4
        %v1215 = vrot.slane %v880, 5
        %v1216 = vsel %vm1188, %v1214, %v1215
        %s1217 = scalar_lea.vmem %s3, 4
        %v1218 = vld [vmem:[%s1217] sm:$0x3]
        %v1219 = vunpack.c.l.b16 %v1192
        %v1220 = vunpack.c.l.b16 %v1195
        %v1221 = vunpack.c.l.b16 %v1199
        %v1222 = vunpack.c.l.b16 %v1202
        %v1223 = vunpack.c.l.b16 %v1206
        %v1224 = vunpack.c.l.b16 %v1209
        %v1225 = vunpack.c.l.b16 %v1213
        %v1226 = vunpack.c.l.b16 %v1216
        %v1227 = vpack.c.b16 %v1220, %v1219
        %v1228 = vpack.c.b16 %v1222, %v1221
        %v1229 = vpack.c.b16 %v1224, %v1223
        %v1230 = vpack.c.b16 %v1226, %v1225
        %v1232 = vsel %vm448, %v1227, 0
        %v1235 = vsel %vm448, %v1228, 0
        %v1238 = vsel %vm448, %v1229, 0
        %v1241 = vsel %vm448, %v1230, 0
        %v1244 = vsel %vm461, %v1218, 0
        %1246 = vmatprep.subr.bf16.mxu0 0
        %1247 = vmatpush1.bf16.msra.mxu0 %v1244
        %1248 = vmatprep.subr.bf16.mxu0 0
        %1249 = vmatpush1.bf16.msra.mxu0 0
        %1250 = vmatprep.subr.bf16.mxu0 0
        %1251 = vmatpush1.bf16.msra.mxu0 0
        %1252 = vmatprep.subr.bf16.mxu0 0
        %1253 = vmatpush1.bf16.msra.mxu0 0
        %1254 = vmatprep.subr.bf16.mxu0 0
        %1255 = vmatpush1.bf16.msra.mxu0 0
        %1256 = vmatprep.subr.bf16.mxu0 0
        %1257 = vmatpush1.bf16.msra.mxu0 0
        %1258 = vmatprep.subr.bf16.mxu0 0
        %1259 = vmatpush1.bf16.msra.mxu0 0
        %1260 = vmatprep.subr.bf16.mxu0 0
        %1261 = vmatpush1.bf16.msra.mxu0 0
        %1262 = vmatprep.subr.bf16.mxu0 0
        %1263 = vmatpush1.bf16.msra.mxu0 0
        %1264 = vmatprep.subr.bf16.mxu0 0
        %1265 = vmatpush1.bf16.msra.mxu0 0
        %1266 = vmatprep.subr.bf16.mxu0 0
        %1267 = vmatpush1.bf16.msra.mxu0 0
        %1268 = vmatprep.subr.bf16.mxu0 0
        %1269 = vmatpush1.bf16.msra.mxu0 0
        %1270 = vmatprep.subr.bf16.mxu0 0
        %1271 = vmatpush1.bf16.msra.mxu0 0
        %1272 = vmatprep.subr.bf16.mxu0 0
        %1273 = vmatpush1.bf16.msra.mxu0 0
        %1274 = vmatprep.subr.bf16.mxu0 0
        %1275 = vmatpush1.bf16.msra.mxu0 0
        %1276 = vmatprep.subr.bf16.mxu0 0
        %1277 = vmatpush1.bf16.msra.mxu0 0
        %1278 = vmatprep.mubr.bf16.mxu0 0
        %1279 = vmatmul.mubr.bf16.gmra.mrb[0].mxu0 %v1232
        %v1280 = vpop.f32.mrb[0].mxu0
        %v1281 = vadd.f32 0.0, %v1280
        %v1282 = vpop.f32.mrb[0].mxu0
        %v1283 = vpop.f32.mrb[0].mxu0
        %v1284 = vadd.f32 0.0, %v1283
        %v1285 = vpop.f32.mrb[0].mxu0
        %1286 = vmatprep.mubr.bf16.mxu0 0
        %1287 = vmatmul.mubr.bf16.gmra.mrb[0].mxu0 %v1235
        %v1288 = vpop.f32.mrb[0].mxu0
        %v1289 = vadd.f32 0.0, %v1288
        %v1290 = vpop.f32.mrb[0].mxu0
        %v1291 = vpop.f32.mrb[0].mxu0
        %v1292 = vadd.f32 0.0, %v1291
        %v1293 = vpop.f32.mrb[0].mxu0
        %1294 = vmatprep.mubr.bf16.mxu0 0
        %1295 = vmatmul.mubr.bf16.gmra.mrb[0].mxu0 %v1238
        %v1296 = vpop.f32.mrb[0].mxu0
        %v1297 = vadd.f32 0.0, %v1296
        %v1298 = vpop.f32.mrb[0].mxu0
        %v1299 = vpop.f32.mrb[0].mxu0
        %v1300 = vadd.f32 0.0, %v1299
        %v1301 = vpop.f32.mrb[0].mxu0
        %1302 = vmatprep.mubr.bf16.mxu0 0
        %1303 = vmatmul.mubr.bf16.gmra.mrb[0].mxu0 %v1241
        %v1304 = vpop.f32.mrb[0].mxu0
        %v1305 = vadd.f32 0.0, %v1304
        %v1306 = vpop.f32.mrb[0].mxu0
        %v1307 = vpop.f32.mrb[0].mxu0
        %v1308 = vadd.f32 0.0, %v1307
        %v1309 = vpop.f32.mrb[0].mxu0
        %1310 = vdwg.mxu0
        %v1311 = vadd.f32 %v1144, %v1281
        %v1312 = vadd.f32 %v1147, %v1284
        %v1313 = vadd.f32 %v1152, %v1289
        %v1314 = vadd.f32 %v1155, %v1292
        %v1315 = vadd.f32 %v1160, %v1297
        %v1316 = vadd.f32 %v1163, %v1300
        %v1317 = vadd.f32 %v1168, %v1305
        %v1318 = vadd.f32 %v1171, %v1308
        %v1319 = vld [vmem:[%s645] sm:$0xf]
        %v1320 = vld [vmem:[%s645 + $0x4] sm:$0xf]
        %v1321 = vld [vmem:[%s645 + $0xc] sm:$0xf]
        %v1322 = vld [vmem:[%s645 + $0x10] sm:$0xf]
        %v1323 = vld [vmem:[%s645 + $0x18] sm:$0xf]
        %v1324 = vld [vmem:[%s645 + $0x1c] sm:$0xf]
        %v1325 = vld [vmem:[%s645 + $0x24] sm:$0xf]
        %v1326 = vld [vmem:[%s645 + $0x28] sm:$0xf]
        %s1327 = scalar_lea.vmem %s3, 6
        %v1328 = vld [vmem:[%s1327] sm:$0x3]
        %v1337 = vunpack.c.l.b16 %v1319
        %v1338 = vunpack.c.l.b16 %v1320
        %v1339 = vunpack.c.l.b16 %v1321
        %v1340 = vunpack.c.l.b16 %v1322
        %v1341 = vunpack.c.l.b16 %v1323
        %v1342 = vunpack.c.l.b16 %v1324
        %v1343 = vunpack.c.l.b16 %v1325
        %v1344 = vunpack.c.l.b16 %v1326
        %v1345 = vpack.c.b16 %v1338, %v1337
        %v1346 = vpack.c.b16 %v1340, %v1339
        %v1347 = vpack.c.b16 %v1342, %v1341
        %v1348 = vpack.c.b16 %v1344, %v1343
        %v1350 = vsel %vm448, %v1345, 0
        %v1353 = vsel %vm448, %v1346, 0
        %v1356 = vsel %vm448, %v1347, 0
        %v1359 = vsel %vm448, %v1348, 0
        %v1362 = vsel %vm461, %v1328, 0
        %1364 = vmatprep.subr.bf16.mxu0 0
        %1365 = vmatpush1.bf16.msra.mxu0 %v1362
        %1366 = vmatprep.subr.bf16.mxu0 0
        %1367 = vmatpush1.bf16.msra.mxu0 0
        %1368 = vmatprep.subr.bf16.mxu0 0
        %1369 = vmatpush1.bf16.msra.mxu0 0
        %1370 = vmatprep.subr.bf16.mxu0 0
        %1371 = vmatpush1.bf16.msra.mxu0 0
        %1372 = vmatprep.subr.bf16.mxu0 0
        %1373 = vmatpush1.bf16.msra.mxu0 0
        %1374 = vmatprep.subr.bf16.mxu0 0
        %1375 = vmatpush1.bf16.msra.mxu0 0
        %1376 = vmatprep.subr.bf16.mxu0 0
        %1377 = vmatpush1.bf16.msra.mxu0 0
        %1378 = vmatprep.subr.bf16.mxu0 0
        %1379 = vmatpush1.bf16.msra.mxu0 0
        %1380 = vmatprep.subr.bf16.mxu0 0
        %1381 = vmatpush1.bf16.msra.mxu0 0
        %1382 = vmatprep.subr.bf16.mxu0 0
        %1383 = vmatpush1.bf16.msra.mxu0 0
        %1384 = vmatprep.subr.bf16.mxu0 0
        %1385 = vmatpush1.bf16.msra.mxu0 0
        %1386 = vmatprep.subr.bf16.mxu0 0
        %1387 = vmatpush1.bf16.msra.mxu0 0
        %1388 = vmatprep.subr.bf16.mxu0 0
        %1389 = vmatpush1.bf16.msra.mxu0 0
        %1390 = vmatprep.subr.bf16.mxu0 0
        %1391 = vmatpush1.bf16.msra.mxu0 0
        %1392 = vmatprep.subr.bf16.mxu0 0
        %1393 = vmatpush1.bf16.msra.mxu0 0
        %1394 = vmatprep.subr.bf16.mxu0 0
        %1395 = vmatpush1.bf16.msra.mxu0 0
        %1396 = vmatprep.mubr.bf16.mxu0 0
        %1397 = vmatmul.mubr.bf16.gmra.mrb[0].mxu0 %v1350
        %v1398 = vpop.f32.mrb[0].mxu0
        %v1399 = vadd.f32 0.0, %v1398
        %v1400 = vpop.f32.mrb[0].mxu0
        %v1401 = vpop.f32.mrb[0].mxu0
        %v1402 = vadd.f32 0.0, %v1401
        %v1403 = vpop.f32.mrb[0].mxu0
        %1404 = vmatprep.mubr.bf16.mxu0 0
        %1405 = vmatmul.mubr.bf16.gmra.mrb[0].mxu0 %v1353
        %v1406 = vpop.f32.mrb[0].mxu0
        %v1407 = vadd.f32 0.0, %v1406
        %v1408 = vpop.f32.mrb[0].mxu0
        %v1409 = vpop.f32.mrb[0].mxu0
        %v1410 = vadd.f32 0.0, %v1409
        %v1411 = vpop.f32.mrb[0].mxu0
        %1412 = vmatprep.mubr.bf16.mxu0 0
        %1413 = vmatmul.mubr.bf16.gmra.mrb[0].mxu0 %v1356
        %v1414 = vpop.f32.mrb[0].mxu0
        %v1415 = vadd.f32 0.0, %v1414
        %v1416 = vpop.f32.mrb[0].mxu0
        %v1417 = vpop.f32.mrb[0].mxu0
        %v1418 = vadd.f32 0.0, %v1417
        %v1419 = vpop.f32.mrb[0].mxu0
        %1420 = vmatprep.mubr.bf16.mxu0 0
        %1421 = vmatmul.mubr.bf16.gmra.mrb[0].mxu0 %v1359
        %v1422 = vpop.f32.mrb[0].mxu0
        %v1423 = vadd.f32 0.0, %v1422
        %v1424 = vpop.f32.mrb[0].mxu0
        %v1425 = vpop.f32.mrb[0].mxu0
        %v1426 = vadd.f32 0.0, %v1425
        %v1427 = vpop.f32.mrb[0].mxu0
        %1428 = vdwg.mxu0
        %v1429 = vadd.f32 %v1311, %v1399
        %v1430 = vadd.f32 %v1312, %v1402
        %v1431 = vadd.f32 %v1313, %v1407
        %v1432 = vadd.f32 %v1314, %v1410
        %v1433 = vadd.f32 %v1315, %v1415
        %v1434 = vadd.f32 %v1316, %v1418
        %v1435 = vadd.f32 %v1317, %v1423
        %v1436 = vadd.f32 %v1318, %v1426
        %v1437 = vld [vmem:[%s645] sm:$0xf]
        %v1438 = vld [vmem:[%s645 + $0x4] sm:$0xf]
        %v1439 = vld [vmem:[%s645 + $0x8] sm:$0x1]
        %v1440 = vld [vmem:[%s645 + $0xc] sm:$0xf]
        %v1441 = vld [vmem:[%s645 + $0x10] sm:$0xf]
        %v1442 = vld [vmem:[%s645 + $0x14] sm:$0x1]
        %v1443 = vld [vmem:[%s645 + $0x18] sm:$0xf]
        %v1444 = vld [vmem:[%s645 + $0x1c] sm:$0xf]
        %v1445 = vld [vmem:[%s645 + $0x20] sm:$0x1]
        %v1446 = vld [vmem:[%s645 + $0x24] sm:$0xf]
        %v1447 = vld [vmem:[%s645 + $0x28] sm:$0xf]
        %v1448 = vld [vmem:[%s645 + $0x2c] sm:$0x1]
        %v1450 = vshrl.u32 %v1437, 16
        %v1452 = vrot.slane %v1450, 4
        %v1453 = vshll.u32 %v1437, 16
        %v1455 = vrot.slane %v1453, 5
        %v1456 = vor.u32 %v1452, %v1455
        %v1457 = vrot.slane %v1456, 4
        %v1459 = vshll.u32 %v1438, 16
        %v1461 = vrot.slane %v1459, 5
        %v1462 = vsel %vm883, %v1457, %v1461
        %v1463 = vshrl.u32 %v1438, 16
        %v1465 = vrot.slane %v1463, 4
        %v1466 = vor.u32 %v1465, %v1461
        %v1467 = vrot.slane %v1466, 4
        %v1469 = vshll.u32 %v1439, 16
        %v1471 = vrot.slane %v1469, 5
        %v1472 = vsel %vm883, %v1467, %v1471
        %v1474 = vshrl.u32 %v1440, 16
        %v1476 = vrot.slane %v1474, 4
        %v1477 = vshll.u32 %v1440, 16
        %v1479 = vrot.slane %v1477, 5
        %v1480 = vor.u32 %v1476, %v1479
        %v1481 = vrot.slane %v1480, 4
        %v1483 = vshll.u32 %v1441, 16
        %v1485 = vrot.slane %v1483, 5
        %v1486 = vsel %vm883, %v1481, %v1485
        %v1487 = vshrl.u32 %v1441, 16
        %v1489 = vrot.slane %v1487, 4
        %v1490 = vor.u32 %v1489, %v1485
        %v1491 = vrot.slane %v1490, 4
        %v1493 = vshll.u32 %v1442, 16
        %v1495 = vrot.slane %v1493, 5
        %v1496 = vsel %vm883, %v1491, %v1495
        %v1498 = vshrl.u32 %v1443, 16
        %v1500 = vrot.slane %v1498, 4
        %v1501 = vshll.u32 %v1443, 16
        %v1503 = vrot.slane %v1501, 5
        %v1504 = vor.u32 %v1500, %v1503
        %v1505 = vrot.slane %v1504, 4
        %v1507 = vshll.u32 %v1444, 16
        %v1509 = vrot.slane %v1507, 5
        %v1510 = vsel %vm883, %v1505, %v1509
        %v1511 = vshrl.u32 %v1444, 16
        %v1513 = vrot.slane %v1511, 4
        %v1514 = vor.u32 %v1513, %v1509
        %v1515 = vrot.slane %v1514, 4
        %v1517 = vshll.u32 %v1445, 16
        %v1519 = vrot.slane %v1517, 5
        %v1520 = vsel %vm883, %v1515, %v1519
        %v1522 = vshrl.u32 %v1446, 16
        %v1524 = vrot.slane %v1522, 4
        %v1525 = vshll.u32 %v1446, 16
        %v1527 = vrot.slane %v1525, 5
        %v1528 = vor.u32 %v1524, %v1527
        %v1529 = vrot.slane %v1528, 4
        %v1531 = vshll.u32 %v1447, 16
        %v1533 = vrot.slane %v1531, 5
        %v1534 = vsel %vm883, %v1529, %v1533
        %v1535 = vshrl.u32 %v1447, 16
        %v1537 = vrot.slane %v1535, 4
        %v1538 = vor.u32 %v1537, %v1533
        %v1539 = vrot.slane %v1538, 4
        %v1541 = vshll.u32 %v1448, 16
        %v1543 = vrot.slane %v1541, 5
        %v1544 = vsel %vm883, %v1539, %v1543
        %s1545 = scalar_lea.vmem %s3, 8
        %v1546 = vld [vmem:[%s1545] sm:$0x3]
        %v1547 = vunpack.c.l.b16 %v1462
        %v1548 = vunpack.c.l.b16 %v1472
        %v1549 = vunpack.c.l.b16 %v1486
        %v1550 = vunpack.c.l.b16 %v1496
        %v1551 = vunpack.c.l.b16 %v1510
        %v1552 = vunpack.c.l.b16 %v1520
        %v1553 = vunpack.c.l.b16 %v1534
        %v1554 = vunpack.c.l.b16 %v1544
        %v1555 = vpack.c.b16 %v1548, %v1547
        %v1556 = vpack.c.b16 %v1550, %v1549
        %v1557 = vpack.c.b16 %v1552, %v1551
        %v1558 = vpack.c.b16 %v1554, %v1553
        %v1560 = vsel %vm448, %v1555, 0
        %v1563 = vsel %vm448, %v1556, 0
        %v1566 = vsel %vm448, %v1557, 0
        %v1569 = vsel %vm448, %v1558, 0
        %v1572 = vsel %vm461, %v1546, 0
        %1574 = vmatprep.subr.bf16.mxu0 0
        %1575 = vmatpush1.bf16.msra.mxu0 %v1572
        %1576 = vmatprep.subr.bf16.mxu0 0
        %1577 = vmatpush1.bf16.msra.mxu0 0
        %1578 = vmatprep.subr.bf16.mxu0 0
        %1579 = vmatpush1.bf16.msra.mxu0 0
        %1580 = vmatprep.subr.bf16.mxu0 0
        %1581 = vmatpush1.bf16.msra.mxu0 0
        %1582 = vmatprep.subr.bf16.mxu0 0
        %1583 = vmatpush1.bf16.msra.mxu0 0
        %1584 = vmatprep.subr.bf16.mxu0 0
        %1585 = vmatpush1.bf16.msra.mxu0 0
        %1586 = vmatprep.subr.bf16.mxu0 0
        %1587 = vmatpush1.bf16.msra.mxu0 0
        %1588 = vmatprep.subr.bf16.mxu0 0
        %1589 = vmatpush1.bf16.msra.mxu0 0
        %1590 = vmatprep.subr.bf16.mxu0 0
        %1591 = vmatpush1.bf16.msra.mxu0 0
        %1592 = vmatprep.subr.bf16.mxu0 0
        %1593 = vmatpush1.bf16.msra.mxu0 0
        %1594 = vmatprep.subr.bf16.mxu0 0
        %1595 = vmatpush1.bf16.msra.mxu0 0
        %1596 = vmatprep.subr.bf16.mxu0 0
        %1597 = vmatpush1.bf16.msra.mxu0 0
        %1598 = vmatprep.subr.bf16.mxu0 0
        %1599 = vmatpush1.bf16.msra.mxu0 0
        %1600 = vmatprep.subr.bf16.mxu0 0
        %1601 = vmatpush1.bf16.msra.mxu0 0
        %1602 = vmatprep.subr.bf16.mxu0 0
        %1603 = vmatpush1.bf16.msra.mxu0 0
        %1604 = vmatprep.subr.bf16.mxu0 0
        %1605 = vmatpush1.bf16.msra.mxu0 0
        %1606 = vmatprep.mubr.bf16.mxu0 0
        %1607 = vmatmul.mubr.bf16.gmra.mrb[0].mxu0 %v1560
        %v1608 = vpop.f32.mrb[0].mxu0
        %v1609 = vadd.f32 0.0, %v1608
        %v1610 = vpop.f32.mrb[0].mxu0
        %v1611 = vpop.f32.mrb[0].mxu0
        %v1612 = vadd.f32 0.0, %v1611
        %v1613 = vpop.f32.mrb[0].mxu0
        %1614 = vmatprep.mubr.bf16.mxu0 0
        %1615 = vmatmul.mubr.bf16.gmra.mrb[0].mxu0 %v1563
        %v1616 = vpop.f32.mrb[0].mxu0
        %v1617 = vadd.f32 0.0, %v1616
        %v1618 = vpop.f32.mrb[0].mxu0
        %v1619 = vpop.f32.mrb[0].mxu0
        %v1620 = vadd.f32 0.0, %v1619
        %v1621 = vpop.f32.mrb[0].mxu0
        %1622 = vmatprep.mubr.bf16.mxu0 0
        %1623 = vmatmul.mubr.bf16.gmra.mrb[0].mxu0 %v1566
        %v1624 = vpop.f32.mrb[0].mxu0
        %v1625 = vadd.f32 0.0, %v1624
        %v1626 = vpop.f32.mrb[0].mxu0
        %v1627 = vpop.f32.mrb[0].mxu0
        %v1628 = vadd.f32 0.0, %v1627
        %v1629 = vpop.f32.mrb[0].mxu0
        %1630 = vmatprep.mubr.bf16.mxu0 0
        %1631 = vmatmul.mubr.bf16.gmra.mrb[0].mxu0 %v1569
        %v1632 = vpop.f32.mrb[0].mxu0
        %v1633 = vadd.f32 0.0, %v1632
        %v1634 = vpop.f32.mrb[0].mxu0
        %v1635 = vpop.f32.mrb[0].mxu0
        %v1636 = vadd.f32 0.0, %v1635
        %v1637 = vpop.f32.mrb[0].mxu0
        %1638 = vdwg.mxu0
        %v1639 = vadd.f32 %v1429, %v1609
        %v1640 = vadd.f32 %v1430, %v1612
        %v1641 = vadd.f32 %v1431, %v1617
        %v1642 = vadd.f32 %v1432, %v1620
        %v1643 = vadd.f32 %v1433, %v1625
        %v1644 = vadd.f32 %v1434, %v1628
        %v1645 = vadd.f32 %v1435, %v1633
        %v1646 = vadd.f32 %v1436, %v1636
        %v1647 = vld [vmem:[%s645] sm:$0xe]
        %v1648 = vld [vmem:[%s645 + $0xc] sm:$0xe]
        %v1649 = vld [vmem:[%s645 + $0x18] sm:$0xe]
        %v1650 = vld [vmem:[%s645 + $0x24] sm:$0xe]
        %v1663 = vrot.slane %v1647, 5
        %v1664 = vrot.slane %v1663, 4
        %v1665 = vrot.slane %v1438, 5
        %v1666 = vsel %vm1188, %v1664, %v1665
        %v1667 = vrot.slane %v1665, 4
        %v1668 = vrot.slane %v1439, 5
        %v1669 = vsel %vm1188, %v1667, %v1668
        %v1670 = vrot.slane %v1648, 5
        %v1671 = vrot.slane %v1670, 4
        %v1672 = vrot.slane %v1441, 5
        %v1673 = vsel %vm1188, %v1671, %v1672
        %v1674 = vrot.slane %v1672, 4
        %v1675 = vrot.slane %v1442, 5
        %v1676 = vsel %vm1188, %v1674, %v1675
        %v1677 = vrot.slane %v1649, 5
        %v1678 = vrot.slane %v1677, 4
        %v1679 = vrot.slane %v1444, 5
        %v1680 = vsel %vm1188, %v1678, %v1679
        %v1681 = vrot.slane %v1679, 4
        %v1682 = vrot.slane %v1445, 5
        %v1683 = vsel %vm1188, %v1681, %v1682
        %v1684 = vrot.slane %v1650, 5
        %v1685 = vrot.slane %v1684, 4
        %v1686 = vrot.slane %v1447, 5
        %v1687 = vsel %vm1188, %v1685, %v1686
        %v1688 = vrot.slane %v1686, 4
        %v1689 = vrot.slane %v1448, 5
        %v1690 = vsel %vm1188, %v1688, %v1689
        %s1691 = scalar_lea.vmem %s3, 10
        %v1692 = vld [vmem:[%s1691] sm:$0x3]
        %v1693 = vunpack.c.l.b16 %v1666
        %v1694 = vunpack.c.l.b16 %v1669
        %v1695 = vunpack.c.l.b16 %v1673
        %v1696 = vunpack.c.l.b16 %v1676
        %v1697 = vunpack.c.l.b16 %v1680
        %v1698 = vunpack.c.l.b16 %v1683
        %v1699 = vunpack.c.l.b16 %v1687
        %v1700 = vunpack.c.l.b16 %v1690
        %v1701 = vpack.c.b16 %v1694, %v1693
        %v1702 = vpack.c.b16 %v1696, %v1695
        %v1703 = vpack.c.b16 %v1698, %v1697
        %v1704 = vpack.c.b16 %v1700, %v1699
        %v1706 = vsel %vm448, %v1701, 0
        %v1709 = vsel %vm448, %v1702, 0
        %v1712 = vsel %vm448, %v1703, 0
        %v1715 = vsel %vm448, %v1704, 0
        %v1718 = vsel %vm461, %v1692, 0
        %1720 = vmatprep.subr.bf16.mxu0 0
        %1721 = vmatpush1.bf16.msra.mxu0 %v1718
        %1722 = vmatprep.subr.bf16.mxu0 0
        %1723 = vmatpush1.bf16.msra.mxu0 0
        %1724 = vmatprep.subr.bf16.mxu0 0
        %1725 = vmatpush1.bf16.msra.mxu0 0
        %1726 = vmatprep.subr.bf16.mxu0 0
        %1727 = vmatpush1.bf16.msra.mxu0 0
        %1728 = vmatprep.subr.bf16.mxu0 0
        %1729 = vmatpush1.bf16.msra.mxu0 0
        %1730 = vmatprep.subr.bf16.mxu0 0
        %1731 = vmatpush1.bf16.msra.mxu0 0
        %1732 = vmatprep.subr.bf16.mxu0 0
        %1733 = vmatpush1.bf16.msra.mxu0 0
        %1734 = vmatprep.subr.bf16.mxu0 0
        %1735 = vmatpush1.bf16.msra.mxu0 0
        %1736 = vmatprep.subr.bf16.mxu0 0
        %1737 = vmatpush1.bf16.msra.mxu0 0
        %1738 = vmatprep.subr.bf16.mxu0 0
        %1739 = vmatpush1.bf16.msra.mxu0 0
        %1740 = vmatprep.subr.bf16.mxu0 0
        %1741 = vmatpush1.bf16.msra.mxu0 0
        %1742 = vmatprep.subr.bf16.mxu0 0
        %1743 = vmatpush1.bf16.msra.mxu0 0
        %1744 = vmatprep.subr.bf16.mxu0 0
        %1745 = vmatpush1.bf16.msra.mxu0 0
        %1746 = vmatprep.subr.bf16.mxu0 0
        %1747 = vmatpush1.bf16.msra.mxu0 0
        %1748 = vmatprep.subr.bf16.mxu0 0
        %1749 = vmatpush1.bf16.msra.mxu0 0
        %1750 = vmatprep.subr.bf16.mxu0 0
        %1751 = vmatpush1.bf16.msra.mxu0 0
        %1752 = vmatprep.mubr.bf16.mxu0 0
        %1753 = vmatmul.mubr.bf16.gmra.mrb[0].mxu0 %v1706
        %v1754 = vpop.f32.mrb[0].mxu0
        %v1755 = vadd.f32 0.0, %v1754
        %v1756 = vpop.f32.mrb[0].mxu0
        %v1757 = vpop.f32.mrb[0].mxu0
        %v1758 = vadd.f32 0.0, %v1757
        %v1759 = vpop.f32.mrb[0].mxu0
        %1760 = vmatprep.mubr.bf16.mxu0 0
        %1761 = vmatmul.mubr.bf16.gmra.mrb[0].mxu0 %v1709
        %v1762 = vpop.f32.mrb[0].mxu0
        %v1763 = vadd.f32 0.0, %v1762
        %v1764 = vpop.f32.mrb[0].mxu0
        %v1765 = vpop.f32.mrb[0].mxu0
        %v1766 = vadd.f32 0.0, %v1765
        %v1767 = vpop.f32.mrb[0].mxu0
        %1768 = vmatprep.mubr.bf16.mxu0 0
        %1769 = vmatmul.mubr.bf16.gmra.mrb[0].mxu0 %v1712
        %v1770 = vpop.f32.mrb[0].mxu0
        %v1771 = vadd.f32 0.0, %v1770
        %v1772 = vpop.f32.mrb[0].mxu0
        %v1773 = vpop.f32.mrb[0].mxu0
        %v1774 = vadd.f32 0.0, %v1773
        %v1775 = vpop.f32.mrb[0].mxu0
        %1776 = vmatprep.mubr.bf16.mxu0 0
        %1777 = vmatmul.mubr.bf16.gmra.mrb[0].mxu0 %v1715
        %v1778 = vpop.f32.mrb[0].mxu0
        %v1779 = vadd.f32 0.0, %v1778
        %v1780 = vpop.f32.mrb[0].mxu0
        %v1781 = vpop.f32.mrb[0].mxu0
        %v1782 = vadd.f32 0.0, %v1781
        %v1783 = vpop.f32.mrb[0].mxu0
        %1784 = vdwg.mxu0
        %v1785 = vadd.f32 %v1639, %v1755
        %v1786 = vadd.f32 %v1640, %v1758
        %v1787 = vadd.f32 %v1641, %v1763
        %v1788 = vadd.f32 %v1642, %v1766
        %v1789 = vadd.f32 %v1643, %v1771
        %v1790 = vadd.f32 %v1644, %v1774
        %v1791 = vadd.f32 %v1645, %v1779
        %v1792 = vadd.f32 %v1646, %v1782
        %s1793 = scalar_lea.vmem [#allocation2], 24
        %v1794 = vld [vmem:[%s1793] sm:$0xf]
        %v1795 = vld [vmem:[%s1793 + $0x4] sm:$0xf]
        %v1796 = vld [vmem:[%s1793 + $0xc] sm:$0xf]
        %v1797 = vld [vmem:[%s1793 + $0x10] sm:$0xf]
        %v1798 = vld [vmem:[%s1793 + $0x18] sm:$0xf]
        %v1799 = vld [vmem:[%s1793 + $0x1c] sm:$0xf]
        %v1800 = vld [vmem:[%s1793 + $0x24] sm:$0xf]
        %v1801 = vld [vmem:[%s1793 + $0x28] sm:$0xf]
        %s1802 = scalar_lea.vmem %s3, 12
        %v1803 = vld [vmem:[%s1802] sm:$0x3]
        %v1812 = vunpack.c.l.b16 %v1794
        %v1813 = vunpack.c.l.b16 %v1795
        %v1814 = vunpack.c.l.b16 %v1796
        %v1815 = vunpack.c.l.b16 %v1797
        %v1816 = vunpack.c.l.b16 %v1798
        %v1817 = vunpack.c.l.b16 %v1799
        %v1818 = vunpack.c.l.b16 %v1800
        %v1819 = vunpack.c.l.b16 %v1801
        %v1820 = vpack.c.b16 %v1813, %v1812
        %v1821 = vpack.c.b16 %v1815, %v1814
        %v1822 = vpack.c.b16 %v1817, %v1816
        %v1823 = vpack.c.b16 %v1819, %v1818
        %v1825 = vsel %vm448, %v1820, 0
        %v1828 = vsel %vm448, %v1821, 0
        %v1831 = vsel %vm448, %v1822, 0
        %v1834 = vsel %vm448, %v1823, 0
        %v1837 = vsel %vm461, %v1803, 0
        %1839 = vmatprep.subr.bf16.mxu0 0
        %1840 = vmatpush1.bf16.msra.mxu0 %v1837
        %1841 = vmatprep.subr.bf16.mxu0 0
        %1842 = vmatpush1.bf16.msra.mxu0 0
        %1843 = vmatprep.subr.bf16.mxu0 0
        %1844 = vmatpush1.bf16.msra.mxu0 0
        %1845 = vmatprep.subr.bf16.mxu0 0
        %1846 = vmatpush1.bf16.msra.mxu0 0
        %1847 = vmatprep.subr.bf16.mxu0 0
        %1848 = vmatpush1.bf16.msra.mxu0 0
        %1849 = vmatprep.subr.bf16.mxu0 0
        %1850 = vmatpush1.bf16.msra.mxu0 0
        %1851 = vmatprep.subr.bf16.mxu0 0
        %1852 = vmatpush1.bf16.msra.mxu0 0
        %1853 = vmatprep.subr.bf16.mxu0 0
        %1854 = vmatpush1.bf16.msra.mxu0 0
        %1855 = vmatprep.subr.bf16.mxu0 0
        %1856 = vmatpush1.bf16.msra.mxu0 0
        %1857 = vmatprep.subr.bf16.mxu0 0
        %1858 = vmatpush1.bf16.msra.mxu0 0
        %1859 = vmatprep.subr.bf16.mxu0 0
        %1860 = vmatpush1.bf16.msra.mxu0 0
        %1861 = vmatprep.subr.bf16.mxu0 0
        %1862 = vmatpush1.bf16.msra.mxu0 0
        %1863 = vmatprep.subr.bf16.mxu0 0
        %1864 = vmatpush1.bf16.msra.mxu0 0
        %1865 = vmatprep.subr.bf16.mxu0 0
        %1866 = vmatpush1.bf16.msra.mxu0 0
        %1867 = vmatprep.subr.bf16.mxu0 0
        %1868 = vmatpush1.bf16.msra.mxu0 0
        %1869 = vmatprep.subr.bf16.mxu0 0
        %1870 = vmatpush1.bf16.msra.mxu0 0
        %1871 = vmatprep.mubr.bf16.mxu0 0
        %1872 = vmatmul.mubr.bf16.gmra.mrb[0].mxu0 %v1825
        %v1873 = vpop.f32.mrb[0].mxu0
        %v1874 = vadd.f32 0.0, %v1873
        %v1875 = vpop.f32.mrb[0].mxu0
        %v1876 = vpop.f32.mrb[0].mxu0
        %v1877 = vadd.f32 0.0, %v1876
        %v1878 = vpop.f32.mrb[0].mxu0
        %1879 = vmatprep.mubr.bf16.mxu0 0
        %1880 = vmatmul.mubr.bf16.gmra.mrb[0].mxu0 %v1828
        %v1881 = vpop.f32.mrb[0].mxu0
        %v1882 = vadd.f32 0.0, %v1881
        %v1883 = vpop.f32.mrb[0].mxu0
        %v1884 = vpop.f32.mrb[0].mxu0
        %v1885 = vadd.f32 0.0, %v1884
        %v1886 = vpop.f32.mrb[0].mxu0
        %1887 = vmatprep.mubr.bf16.mxu0 0
        %1888 = vmatmul.mubr.bf16.gmra.mrb[0].mxu0 %v1831
        %v1889 = vpop.f32.mrb[0].mxu0
        %v1890 = vadd.f32 0.0, %v1889
        %v1891 = vpop.f32.mrb[0].mxu0
        %v1892 = vpop.f32.mrb[0].mxu0
        %v1893 = vadd.f32 0.0, %v1892
        %v1894 = vpop.f32.mrb[0].mxu0
        %1895 = vmatprep.mubr.bf16.mxu0 0
        %1896 = vmatmul.mubr.bf16.gmra.mrb[0].mxu0 %v1834
        %v1897 = vpop.f32.mrb[0].mxu0
        %v1898 = vadd.f32 0.0, %v1897
        %v1899 = vpop.f32.mrb[0].mxu0
        %v1900 = vpop.f32.mrb[0].mxu0
        %v1901 = vadd.f32 0.0, %v1900
        %v1902 = vpop.f32.mrb[0].mxu0
        %1903 = vdwg.mxu0
        %v1904 = vadd.f32 %v1785, %v1874
        %v1905 = vadd.f32 %v1786, %v1877
        %v1906 = vadd.f32 %v1787, %v1882
        %v1907 = vadd.f32 %v1788, %v1885
        %v1908 = vadd.f32 %v1789, %v1890
        %v1909 = vadd.f32 %v1790, %v1893
        %v1910 = vadd.f32 %v1791, %v1898
        %v1911 = vadd.f32 %v1792, %v1901
        %v1912 = vld [vmem:[%s1793] sm:$0xf]
        %v1913 = vld [vmem:[%s1793 + $0x4] sm:$0xf]
        %v1914 = vld [vmem:[%s1793 + $0x8] sm:$0x1]
        %v1915 = vld [vmem:[%s1793 + $0xc] sm:$0xf]
        %v1916 = vld [vmem:[%s1793 + $0x10] sm:$0xf]
        %v1917 = vld [vmem:[%s1793 + $0x14] sm:$0x1]
        %v1918 = vld [vmem:[%s1793 + $0x18] sm:$0xf]
        %v1919 = vld [vmem:[%s1793 + $0x1c] sm:$0xf]
        %v1920 = vld [vmem:[%s1793 + $0x20] sm:$0x1]
        %v1921 = vld [vmem:[%s1793 + $0x24] sm:$0xf]
        %v1922 = vld [vmem:[%s1793 + $0x28] sm:$0xf]
        %v1923 = vld [vmem:[%s1793 + $0x2c] sm:$0x1]
        %v1925 = vshrl.u32 %v1912, 16
        %v1927 = vrot.slane %v1925, 4
        %v1928 = vshll.u32 %v1912, 16
        %v1930 = vrot.slane %v1928, 5
        %v1931 = vor.u32 %v1927, %v1930
        %v1932 = vrot.slane %v1931, 4
        %v1934 = vshll.u32 %v1913, 16
        %v1936 = vrot.slane %v1934, 5
        %v1937 = vsel %vm883, %v1932, %v1936
        %v1938 = vshrl.u32 %v1913, 16
        %v1940 = vrot.slane %v1938, 4
        %v1941 = vor.u32 %v1940, %v1936
        %v1942 = vrot.slane %v1941, 4
        %v1944 = vshll.u32 %v1914, 16
        %v1946 = vrot.slane %v1944, 5
        %v1947 = vsel %vm883, %v1942, %v1946
        %v1949 = vshrl.u32 %v1915, 16
        %v1951 = vrot.slane %v1949, 4
        %v1952 = vshll.u32 %v1915, 16
        %v1954 = vrot.slane %v1952, 5
        %v1955 = vor.u32 %v1951, %v1954
        %v1956 = vrot.slane %v1955, 4
        %v1958 = vshll.u32 %v1916, 16
        %v1960 = vrot.slane %v1958, 5
        %v1961 = vsel %vm883, %v1956, %v1960
        %v1962 = vshrl.u32 %v1916, 16
        %v1964 = vrot.slane %v1962, 4
        %v1965 = vor.u32 %v1964, %v1960
        %v1966 = vrot.slane %v1965, 4
        %v1968 = vshll.u32 %v1917, 16
        %v1970 = vrot.slane %v1968, 5
        %v1971 = vsel %vm883, %v1966, %v1970
        %v1973 = vshrl.u32 %v1918, 16
        %v1975 = vrot.slane %v1973, 4
        %v1976 = vshll.u32 %v1918, 16
        %v1978 = vrot.slane %v1976, 5
        %v1979 = vor.u32 %v1975, %v1978
        %v1980 = vrot.slane %v1979, 4
        %v1982 = vshll.u32 %v1919, 16
        %v1984 = vrot.slane %v1982, 5
        %v1985 = vsel %vm883, %v1980, %v1984
        %v1986 = vshrl.u32 %v1919, 16
        %v1988 = vrot.slane %v1986, 4
        %v1989 = vor.u32 %v1988, %v1984
        %v1990 = vrot.slane %v1989, 4
        %v1992 = vshll.u32 %v1920, 16
        %v1994 = vrot.slane %v1992, 5
        %v1995 = vsel %vm883, %v1990, %v1994
        %v1997 = vshrl.u32 %v1921, 16
        %v1999 = vrot.slane %v1997, 4
        %v2000 = vshll.u32 %v1921, 16
        %v2002 = vrot.slane %v2000, 5
        %v2003 = vor.u32 %v1999, %v2002
        %v2004 = vrot.slane %v2003, 4
        %v2006 = vshll.u32 %v1922, 16
        %v2008 = vrot.slane %v2006, 5
        %v2009 = vsel %vm883, %v2004, %v2008
        %v2010 = vshrl.u32 %v1922, 16
        %v2012 = vrot.slane %v2010, 4
        %v2013 = vor.u32 %v2012, %v2008
        %v2014 = vrot.slane %v2013, 4
        %v2016 = vshll.u32 %v1923, 16
        %v2018 = vrot.slane %v2016, 5
        %v2019 = vsel %vm883, %v2014, %v2018
        %s2020 = scalar_lea.vmem %s3, 14
        %v2021 = vld [vmem:[%s2020] sm:$0x3]
        %v2022 = vunpack.c.l.b16 %v1937
        %v2023 = vunpack.c.l.b16 %v1947
        %v2024 = vunpack.c.l.b16 %v1961
        %v2025 = vunpack.c.l.b16 %v1971
        %v2026 = vunpack.c.l.b16 %v1985
        %v2027 = vunpack.c.l.b16 %v1995
        %v2028 = vunpack.c.l.b16 %v2009
        %v2029 = vunpack.c.l.b16 %v2019
        %v2030 = vpack.c.b16 %v2023, %v2022
        %v2031 = vpack.c.b16 %v2025, %v2024
        %v2032 = vpack.c.b16 %v2027, %v2026
        %v2033 = vpack.c.b16 %v2029, %v2028
        %v2035 = vsel %vm448, %v2030, 0
        %v2038 = vsel %vm448, %v2031, 0
        %v2041 = vsel %vm448, %v2032, 0
        %v2044 = vsel %vm448, %v2033, 0
        %v2047 = vsel %vm461, %v2021, 0
        %2049 = vmatprep.subr.bf16.mxu0 0
        %2050 = vmatpush1.bf16.msra.mxu0 %v2047
        %2051 = vmatprep.subr.bf16.mxu0 0
        %2052 = vmatpush1.bf16.msra.mxu0 0
        %2053 = vmatprep.subr.bf16.mxu0 0
        %2054 = vmatpush1.bf16.msra.mxu0 0
        %2055 = vmatprep.subr.bf16.mxu0 0
        %2056 = vmatpush1.bf16.msra.mxu0 0
        %2057 = vmatprep.subr.bf16.mxu0 0
        %2058 = vmatpush1.bf16.msra.mxu0 0
        %2059 = vmatprep.subr.bf16.mxu0 0
        %2060 = vmatpush1.bf16.msra.mxu0 0
        %2061 = vmatprep.subr.bf16.mxu0 0
        %2062 = vmatpush1.bf16.msra.mxu0 0
        %2063 = vmatprep.subr.bf16.mxu0 0
        %2064 = vmatpush1.bf16.msra.mxu0 0
        %2065 = vmatprep.subr.bf16.mxu0 0
        %2066 = vmatpush1.bf16.msra.mxu0 0
        %2067 = vmatprep.subr.bf16.mxu0 0
        %2068 = vmatpush1.bf16.msra.mxu0 0
        %2069 = vmatprep.subr.bf16.mxu0 0
        %2070 = vmatpush1.bf16.msra.mxu0 0
        %2071 = vmatprep.subr.bf16.mxu0 0
        %2072 = vmatpush1.bf16.msra.mxu0 0
        %2073 = vmatprep.subr.bf16.mxu0 0
        %2074 = vmatpush1.bf16.msra.mxu0 0
        %2075 = vmatprep.subr.bf16.mxu0 0
        %2076 = vmatpush1.bf16.msra.mxu0 0
        %2077 = vmatprep.subr.bf16.mxu0 0
        %2078 = vmatpush1.bf16.msra.mxu0 0
        %2079 = vmatprep.subr.bf16.mxu0 0
        %2080 = vmatpush1.bf16.msra.mxu0 0
        %2081 = vmatprep.mubr.bf16.mxu0 0
        %2082 = vmatmul.mubr.bf16.gmra.mrb[0].mxu0 %v2035
        %v2083 = vpop.f32.mrb[0].mxu0
        %v2084 = vadd.f32 0.0, %v2083
        %v2085 = vpop.f32.mrb[0].mxu0
        %v2086 = vpop.f32.mrb[0].mxu0
        %v2087 = vadd.f32 0.0, %v2086
        %v2088 = vpop.f32.mrb[0].mxu0
        %2089 = vmatprep.mubr.bf16.mxu0 0
        %2090 = vmatmul.mubr.bf16.gmra.mrb[0].mxu0 %v2038
        %v2091 = vpop.f32.mrb[0].mxu0
        %v2092 = vadd.f32 0.0, %v2091
        %v2093 = vpop.f32.mrb[0].mxu0
        %v2094 = vpop.f32.mrb[0].mxu0
        %v2095 = vadd.f32 0.0, %v2094
        %v2096 = vpop.f32.mrb[0].mxu0
        %2097 = vmatprep.mubr.bf16.mxu0 0
        %2098 = vmatmul.mubr.bf16.gmra.mrb[0].mxu0 %v2041
        %v2099 = vpop.f32.mrb[0].mxu0
        %v2100 = vadd.f32 0.0, %v2099
        %v2101 = vpop.f32.mrb[0].mxu0
        %v2102 = vpop.f32.mrb[0].mxu0
        %v2103 = vadd.f32 0.0, %v2102
        %v2104 = vpop.f32.mrb[0].mxu0
        %2105 = vmatprep.mubr.bf16.mxu0 0
        %2106 = vmatmul.mubr.bf16.gmra.mrb[0].mxu0 %v2044
        %v2107 = vpop.f32.mrb[0].mxu0
        %v2108 = vadd.f32 0.0, %v2107
        %v2109 = vpop.f32.mrb[0].mxu0
        %v2110 = vpop.f32.mrb[0].mxu0
        %v2111 = vadd.f32 0.0, %v2110
        %v2112 = vpop.f32.mrb[0].mxu0
        %2113 = vdwg.mxu0
        %v2114 = vadd.f32 %v1904, %v2084
        %v2115 = vadd.f32 %v1905, %v2087
        %v2116 = vadd.f32 %v1906, %v2092
        %v2117 = vadd.f32 %v1907, %v2095
        %v2118 = vadd.f32 %v1908, %v2100
        %v2119 = vadd.f32 %v1909, %v2103
        %v2120 = vadd.f32 %v1910, %v2108
        %v2121 = vadd.f32 %v1911, %v2111
        %v2122 = vld [vmem:[%s1793] sm:$0xe]
        %v2123 = vld [vmem:[%s1793 + $0xc] sm:$0xe]
        %v2124 = vld [vmem:[%s1793 + $0x18] sm:$0xe]
        %v2125 = vld [vmem:[%s1793 + $0x24] sm:$0xe]
        %v2138 = vrot.slane %v2122, 5
        %v2139 = vrot.slane %v2138, 4
        %v2140 = vrot.slane %v1913, 5
        %v2141 = vsel %vm1188, %v2139, %v2140
        %v2142 = vrot.slane %v2140, 4
        %v2143 = vrot.slane %v1914, 5
        %v2144 = vsel %vm1188, %v2142, %v2143
        %v2145 = vrot.slane %v2123, 5
        %v2146 = vrot.slane %v2145, 4
        %v2147 = vrot.slane %v1916, 5
        %v2148 = vsel %vm1188, %v2146, %v2147
        %v2149 = vrot.slane %v2147, 4
        %v2150 = vrot.slane %v1917, 5
        %v2151 = vsel %vm1188, %v2149, %v2150
        %v2152 = vrot.slane %v2124, 5
        %v2153 = vrot.slane %v2152, 4
        %v2154 = vrot.slane %v1919, 5
        %v2155 = vsel %vm1188, %v2153, %v2154
        %v2156 = vrot.slane %v2154, 4
        %v2157 = vrot.slane %v1920, 5
        %v2158 = vsel %vm1188, %v2156, %v2157
        %v2159 = vrot.slane %v2125, 5
        %v2160 = vrot.slane %v2159, 4
        %v2161 = vrot.slane %v1922, 5
        %v2162 = vsel %vm1188, %v2160, %v2161
        %v2163 = vrot.slane %v2161, 4
        %v2164 = vrot.slane %v1923, 5
        %v2165 = vsel %vm1188, %v2163, %v2164
        %s2166 = scalar_lea.vmem %s3, 16
        %v2167 = vld [vmem:[%s2166] sm:$0x3]
        %v2168 = vunpack.c.l.b16 %v2141
        %v2169 = vunpack.c.l.b16 %v2144
        %v2170 = vunpack.c.l.b16 %v2148
        %v2171 = vunpack.c.l.b16 %v2151
        %v2172 = vunpack.c.l.b16 %v2155
        %v2173 = vunpack.c.l.b16 %v2158
        %v2174 = vunpack.c.l.b16 %v2162
        %v2175 = vunpack.c.l.b16 %v2165
        %v2176 = vpack.c.b16 %v2169, %v2168
        %v2177 = vpack.c.b16 %v2171, %v2170
        %v2178 = vpack.c.b16 %v2173, %v2172
        %v2179 = vpack.c.b16 %v2175, %v2174
        %v2181 = vsel %vm448, %v2176, 0
        %v2184 = vsel %vm448, %v2177, 0
        %v2187 = vsel %vm448, %v2178, 0
        %v2190 = vsel %vm448, %v2179, 0
        %v2193 = vsel %vm461, %v2167, 0
        %2195 = vmatprep.subr.bf16.mxu0 0
        %2196 = vmatpush1.bf16.msra.mxu0 %v2193
        %2197 = vmatprep.subr.bf16.mxu0 0
        %2198 = vmatpush1.bf16.msra.mxu0 0
        %2199 = vmatprep.subr.bf16.mxu0 0
        %2200 = vmatpush1.bf16.msra.mxu0 0
        %2201 = vmatprep.subr.bf16.mxu0 0
        %2202 = vmatpush1.bf16.msra.mxu0 0
        %2203 = vmatprep.subr.bf16.mxu0 0
        %2204 = vmatpush1.bf16.msra.mxu0 0
        %2205 = vmatprep.subr.bf16.mxu0 0
        %2206 = vmatpush1.bf16.msra.mxu0 0
        %2207 = vmatprep.subr.bf16.mxu0 0
        %2208 = vmatpush1.bf16.msra.mxu0 0
        %2209 = vmatprep.subr.bf16.mxu0 0
        %2210 = vmatpush1.bf16.msra.mxu0 0
        %2211 = vmatprep.subr.bf16.mxu0 0
        %2212 = vmatpush1.bf16.msra.mxu0 0
        %2213 = vmatprep.subr.bf16.mxu0 0
        %2214 = vmatpush1.bf16.msra.mxu0 0
        %2215 = vmatprep.subr.bf16.mxu0 0
        %2216 = vmatpush1.bf16.msra.mxu0 0
        %2217 = vmatprep.subr.bf16.mxu0 0
        %2218 = vmatpush1.bf16.msra.mxu0 0
        %2219 = vmatprep.subr.bf16.mxu0 0
        %2220 = vmatpush1.bf16.msra.mxu0 0
        %2221 = vmatprep.subr.bf16.mxu0 0
        %2222 = vmatpush1.bf16.msra.mxu0 0
        %2223 = vmatprep.subr.bf16.mxu0 0
        %2224 = vmatpush1.bf16.msra.mxu0 0
        %2225 = vmatprep.subr.bf16.mxu0 0
        %2226 = vmatpush1.bf16.msra.mxu0 0
        %2227 = vmatprep.mubr.bf16.mxu0 0
        %2228 = vmatmul.mubr.bf16.gmra.mrb[0].mxu0 %v2181
        %v2229 = vpop.f32.mrb[0].mxu0
        %v2230 = vadd.f32 0.0, %v2229
        %v2231 = vpop.f32.mrb[0].mxu0
        %v2232 = vpop.f32.mrb[0].mxu0
        %v2233 = vadd.f32 0.0, %v2232
        %v2234 = vpop.f32.mrb[0].mxu0
        %2235 = vmatprep.mubr.bf16.mxu0 0
        %2236 = vmatmul.mubr.bf16.gmra.mrb[0].mxu0 %v2184
        %v2237 = vpop.f32.mrb[0].mxu0
        %v2238 = vadd.f32 0.0, %v2237
        %v2239 = vpop.f32.mrb[0].mxu0
        %v2240 = vpop.f32.mrb[0].mxu0
        %v2241 = vadd.f32 0.0, %v2240
        %v2242 = vpop.f32.mrb[0].mxu0
        %2243 = vmatprep.mubr.bf16.mxu0 0
        %2244 = vmatmul.mubr.bf16.gmra.mrb[0].mxu0 %v2187
        %v2245 = vpop.f32.mrb[0].mxu0
        %v2246 = vadd.f32 0.0, %v2245
        %v2247 = vpop.f32.mrb[0].mxu0
        %v2248 = vpop.f32.mrb[0].mxu0
        %v2249 = vadd.f32 0.0, %v2248
        %v2250 = vpop.f32.mrb[0].mxu0
        %2251 = vmatprep.mubr.bf16.mxu0 0
        %2252 = vmatmul.mubr.bf16.gmra.mrb[0].mxu0 %v2190
        %v2253 = vpop.f32.mrb[0].mxu0
        %v2254 = vadd.f32 0.0, %v2253
        %v2255 = vpop.f32.mrb[0].mxu0
        %v2256 = vpop.f32.mrb[0].mxu0
        %v2257 = vadd.f32 0.0, %v2256
        %v2258 = vpop.f32.mrb[0].mxu0
        %2259 = vdwg.mxu0
        %v2260 = vadd.f32 %v2114, %v2230
        %v2261 = vadd.f32 %v2115, %v2233
        %v2262 = vadd.f32 %v2116, %v2238
        %v2263 = vadd.f32 %v2117, %v2241
        %v2264 = vadd.f32 %v2118, %v2246
        %v2265 = vadd.f32 %v2119, %v2249
        %v2266 = vadd.f32 %v2120, %v2254
        %v2267 = vadd.f32 %v2121, %v2257
        %v2268 = vld [vmem:[%s4] sm:$0x1]
        %v2270 = vlaneseq
        %v2271 = vshrl.u32 %v2270, 7
        %v2272 = vsub.s32 0, %v2271
        %v2273 = vrot.slane %v2268, %v2272
        %v2275 = vadd.f32 %v2260, %v2273
        %v2276 = vadd.f32 %v2261, %v2273
        %v2277 = vadd.f32 %v2262, %v2273
        %v2278 = vadd.f32 %v2263, %v2273
        %v2279 = vadd.f32 %v2264, %v2273
        %v2280 = vadd.f32 %v2265, %v2273
        %v2281 = vadd.f32 %v2266, %v2273
        %v2282 = vadd.f32 %v2267, %v2273
        %v2283 = vmax.f32 %v2275, 0.0
        %v2284 = vmax.f32 %v2276, 0.0
        %v2285 = vmax.f32 %v2277, 0.0
        %v2286 = vmax.f32 %v2278, 0.0
        %v2287 = vmax.f32 %v2279, 0.0
        %v2288 = vmax.f32 %v2280, 0.0
        %v2289 = vmax.f32 %v2281, 0.0
        %v2290 = vmax.f32 %v2282, 0.0
        %v2291 = vpack.c.bf16 %v2284, %v2283
        %v2292 = vpack.c.bf16 %v2286, %v2285
        %v2293 = vpack.c.bf16 %v2288, %v2287
        %v2294 = vpack.c.bf16 %v2290, %v2289
        %v2295 = vld [vmem:[%s5] sm:$0x3]
        %v2296 = vld [vmem:[%s6] sm:$0x1]
        %v2298 = vlaneseq
        %v2299 = vshrl.u32 %v2298, 7
        %v2300 = vsub.s32 0, %v2299
        %v2301 = vrot.slane %v2296, %v2300
        %v2304 = vsel %vm448, %v2291, 0
        %v2307 = vsel %vm448, %v2292, 0
        %v2310 = vsel %vm448, %v2293, 0
        %v2313 = vsel %vm448, %v2294, 0
        %v2316 = vsel %vm461, %v2295, 0
        %2318 = vmatprep.subr.bf16.mxu0 0
        %2319 = vmatpush1.bf16.msra.mxu0 %v2316
        %2320 = vmatprep.subr.bf16.mxu0 0
        %2321 = vmatpush1.bf16.msra.mxu0 0
        %2322 = vmatprep.subr.bf16.mxu0 0
        %2323 = vmatpush1.bf16.msra.mxu0 0
        %2324 = vmatprep.subr.bf16.mxu0 0
        %2325 = vmatpush1.bf16.msra.mxu0 0
        %2326 = vmatprep.subr.bf16.mxu0 0
        %2327 = vmatpush1.bf16.msra.mxu0 0
        %2328 = vmatprep.subr.bf16.mxu0 0
        %2329 = vmatpush1.bf16.msra.mxu0 0
        %2330 = vmatprep.subr.bf16.mxu0 0
        %2331 = vmatpush1.bf16.msra.mxu0 0
        %2332 = vmatprep.subr.bf16.mxu0 0
        %2333 = vmatpush1.bf16.msra.mxu0 0
        %2334 = vmatprep.subr.bf16.mxu0 0
        %2335 = vmatpush1.bf16.msra.mxu0 0
        %2336 = vmatprep.subr.bf16.mxu0 0
        %2337 = vmatpush1.bf16.msra.mxu0 0
        %2338 = vmatprep.subr.bf16.mxu0 0
        %2339 = vmatpush1.bf16.msra.mxu0 0
        %2340 = vmatprep.subr.bf16.mxu0 0
        %2341 = vmatpush1.bf16.msra.mxu0 0
        %2342 = vmatprep.subr.bf16.mxu0 0
        %2343 = vmatpush1.bf16.msra.mxu0 0
        %2344 = vmatprep.subr.bf16.mxu0 0
        %2345 = vmatpush1.bf16.msra.mxu0 0
        %2346 = vmatprep.subr.bf16.mxu0 0
        %2347 = vmatpush1.bf16.msra.mxu0 0
        %2348 = vmatprep.subr.bf16.mxu0 0
        %2349 = vmatpush1.bf16.msra.mxu0 0
        %2350 = vmatprep.mubr.bf16.mxu0 0
        %2351 = vmatmul.mubr.bf16.gmra.mrb[0].mxu0 %v2304
        %v2352 = vpop.f32.mrb[0].mxu0
        %v2353 = vadd.f32 %v2301, %v2352
        %v2354 = vpop.f32.mrb[0].mxu0
        %v2355 = vpop.f32.mrb[0].mxu0
        %v2356 = vadd.f32 %v2301, %v2355
        %v2357 = vpop.f32.mrb[0].mxu0
        %2358 = vmatprep.mubr.bf16.mxu0 0
        %2359 = vmatmul.mubr.bf16.gmra.mrb[0].mxu0 %v2307
        %v2360 = vpop.f32.mrb[0].mxu0
        %v2361 = vadd.f32 %v2301, %v2360
        %v2362 = vpop.f32.mrb[0].mxu0
        %v2363 = vpop.f32.mrb[0].mxu0
        %v2364 = vadd.f32 %v2301, %v2363
        %v2365 = vpop.f32.mrb[0].mxu0
        %2366 = vmatprep.mubr.bf16.mxu0 0
        %2367 = vmatmul.mubr.bf16.gmra.mrb[0].mxu0 %v2310
        %v2368 = vpop.f32.mrb[0].mxu0
        %v2369 = vadd.f32 %v2301, %v2368
        %v2370 = vpop.f32.mrb[0].mxu0
        %v2371 = vpop.f32.mrb[0].mxu0
        %v2372 = vadd.f32 %v2301, %v2371
        %v2373 = vpop.f32.mrb[0].mxu0
        %2374 = vmatprep.mubr.bf16.mxu0 0
        %2375 = vmatmul.mubr.bf16.gmra.mrb[0].mxu0 %v2313
        %v2376 = vpop.f32.mrb[0].mxu0
        %v2377 = vadd.f32 %v2301, %v2376
        %v2378 = vpop.f32.mrb[0].mxu0
        %v2379 = vpop.f32.mrb[0].mxu0
        %v2380 = vadd.f32 %v2301, %v2379
        %v2381 = vpop.f32.mrb[0].mxu0
        %2382 = vdwg.mxu0
        %v2383 = vld [vmem:[%s413] sm:$0xf]
        %v2384 = vld [vmem:[%s413 + $0x4] sm:$0xf]
        %v2385 = vld [vmem:[%s413 + $0x8] sm:$0xf]
        %v2386 = vld [vmem:[%s413 + $0xc] sm:$0xf]
        %v2387 = vld [vmem:[%s413 + $0x10] sm:$0xf]
        %v2388 = vld [vmem:[%s413 + $0x14] sm:$0xf]
        %v2389 = vld [vmem:[%s413 + $0x18] sm:$0xf]
        %v2390 = vld [vmem:[%s413 + $0x1c] sm:$0xf]
        %v2391 = vld [vmem:[%s7] sm:$0x3]
        %v2392 = vld [vmem:[%s8] sm:$0x1]
        %v2394 = vlaneseq
        %v2395 = vshrl.u32 %v2394, 7
        %v2396 = vsub.s32 0, %v2395
        %v2397 = vrot.slane %v2392, %v2396
        %v2407 = vunpack.c.l.b16 %v2383
        %v2408 = vunpack.c.l.b16 %v2384
        %v2409 = vunpack.c.l.b16 %v2385
        %v2410 = vunpack.c.l.b16 %v2386
        %v2411 = vunpack.c.l.b16 %v2387
        %v2412 = vunpack.c.l.b16 %v2388
        %v2413 = vunpack.c.l.b16 %v2389
        %v2414 = vunpack.c.l.b16 %v2390
        %v2415 = vpack.c.b16 %v2408, %v2407
        %v2416 = vpack.c.b16 %v2410, %v2409
        %v2417 = vpack.c.b16 %v2412, %v2411
        %v2418 = vpack.c.b16 %v2414, %v2413
        %v2420 = vsel %vm448, %v2415, 0
        %v2423 = vsel %vm448, %v2416, 0
        %v2426 = vsel %vm448, %v2417, 0
        %v2429 = vsel %vm448, %v2418, 0
        %v2432 = vsel %vm461, %v2391, 0
        %2434 = vmatprep.subr.bf16.mxu0 0
        %2435 = vmatpush1.bf16.msra.mxu0 %v2432
        %2436 = vmatprep.subr.bf16.mxu0 0
        %2437 = vmatpush1.bf16.msra.mxu0 0
        %2438 = vmatprep.subr.bf16.mxu0 0
        %2439 = vmatpush1.bf16.msra.mxu0 0
        %2440 = vmatprep.subr.bf16.mxu0 0
        %2441 = vmatpush1.bf16.msra.mxu0 0
        %2442 = vmatprep.subr.bf16.mxu0 0
        %2443 = vmatpush1.bf16.msra.mxu0 0
        %2444 = vmatprep.subr.bf16.mxu0 0
        %2445 = vmatpush1.bf16.msra.mxu0 0
        %2446 = vmatprep.subr.bf16.mxu0 0
        %2447 = vmatpush1.bf16.msra.mxu0 0
        %2448 = vmatprep.subr.bf16.mxu0 0
        %2449 = vmatpush1.bf16.msra.mxu0 0
        %2450 = vmatprep.subr.bf16.mxu0 0
        %2451 = vmatpush1.bf16.msra.mxu0 0
        %2452 = vmatprep.subr.bf16.mxu0 0
        %2453 = vmatpush1.bf16.msra.mxu0 0
        %2454 = vmatprep.subr.bf16.mxu0 0
        %2455 = vmatpush1.bf16.msra.mxu0 0
        %2456 = vmatprep.subr.bf16.mxu0 0
        %2457 = vmatpush1.bf16.msra.mxu0 0
        %2458 = vmatprep.subr.bf16.mxu0 0
        %2459 = vmatpush1.bf16.msra.mxu0 0
        %2460 = vmatprep.subr.bf16.mxu0 0
        %2461 = vmatpush1.bf16.msra.mxu0 0
        %2462 = vmatprep.subr.bf16.mxu0 0
        %2463 = vmatpush1.bf16.msra.mxu0 0
        %2464 = vmatprep.subr.bf16.mxu0 0
        %2465 = vmatpush1.bf16.msra.mxu0 0
        %2466 = vmatprep.mubr.bf16.mxu0 0
        %2467 = vmatmul.mubr.bf16.gmra.mrb[0].mxu0 %v2420
        %v2468 = vpop.f32.mrb[0].mxu0
        %v2469 = vadd.f32 %v2397, %v2468
        %v2470 = vpop.f32.mrb[0].mxu0
        %v2471 = vpop.f32.mrb[0].mxu0
        %v2472 = vadd.f32 %v2397, %v2471
        %v2473 = vpop.f32.mrb[0].mxu0
        %2474 = vmatprep.mubr.bf16.mxu0 0
        %2475 = vmatmul.mubr.bf16.gmra.mrb[0].mxu0 %v2423
        %v2476 = vpop.f32.mrb[0].mxu0
        %v2477 = vadd.f32 %v2397, %v2476
        %v2478 = vpop.f32.mrb[0].mxu0
        %v2479 = vpop.f32.mrb[0].mxu0
        %v2480 = vadd.f32 %v2397, %v2479
        %v2481 = vpop.f32.mrb[0].mxu0
        %2482 = vmatprep.mubr.bf16.mxu0 0
        %2483 = vmatmul.mubr.bf16.gmra.mrb[0].mxu0 %v2426
        %v2484 = vpop.f32.mrb[0].mxu0
        %v2485 = vadd.f32 %v2397, %v2484
        %v2486 = vpop.f32.mrb[0].mxu0
        %v2487 = vpop.f32.mrb[0].mxu0
        %v2488 = vadd.f32 %v2397, %v2487
        %v2489 = vpop.f32.mrb[0].mxu0
        %2490 = vmatprep.mubr.bf16.mxu0 0
        %2491 = vmatmul.mubr.bf16.gmra.mrb[0].mxu0 %v2429
        %v2492 = vpop.f32.mrb[0].mxu0
        %v2493 = vadd.f32 %v2397, %v2492
        %v2494 = vpop.f32.mrb[0].mxu0
        %v2495 = vpop.f32.mrb[0].mxu0
        %v2496 = vadd.f32 %v2397, %v2495
        %v2497 = vpop.f32.mrb[0].mxu0
        %2498 = vdwg.mxu0
        %v2499 = vadd.f32 %v2353, %v2469
        %v2500 = vadd.f32 %v2356, %v2472
        %v2501 = vadd.f32 %v2361, %v2477
        %v2502 = vadd.f32 %v2364, %v2480
        %v2503 = vadd.f32 %v2369, %v2485
        %v2504 = vadd.f32 %v2372, %v2488
        %v2505 = vadd.f32 %v2377, %v2493
        %v2506 = vadd.f32 %v2380, %v2496
        %v2507 = vmax.f32 %v2499, 0.0
        %v2508 = vmax.f32 %v2500, 0.0
        %v2509 = vmax.f32 %v2501, 0.0
        %v2510 = vmax.f32 %v2502, 0.0
        %v2511 = vmax.f32 %v2503, 0.0
        %v2512 = vmax.f32 %v2504, 0.0
        %v2513 = vmax.f32 %v2505, 0.0
        %v2514 = vmax.f32 %v2506, 0.0
        %vm2515 = vcmask 130048
        %2516 = vst.msk [vmem:[%s372] sm:$0xff] %vm2515, %v2507
        %2517 = vst.msk [vmem:[%s372 + $0x8] sm:$0xff] %vm2515, %v2508
        %2518 = vst.msk [vmem:[%s372 + $0x10] sm:$0xff] %vm2515, %v2509
        %2519 = vst.msk [vmem:[%s372 + $0x18] sm:$0xff] %vm2515, %v2510
        %2520 = vst.msk [vmem:[%s372 + $0x20] sm:$0xff] %vm2515, %v2511
        %2521 = vst.msk [vmem:[%s372 + $0x28] sm:$0xff] %vm2515, %v2512
        %2522 = vst.msk [vmem:[%s372 + $0x30] sm:$0xff] %vm2515, %v2513
        %2523 = vst.msk [vmem:[%s372 + $0x38] sm:$0xff] %vm2515, %v2514
        %2524 = vst.msk [vmem:[%s379] sm:$0xff] %vm2515, %v2499
        %2525 = vst.msk [vmem:[%s379 + $0x8] sm:$0xff] %vm2515, %v2500
        %2526 = vst.msk [vmem:[%s379 + $0x10] sm:$0xff] %vm2515, %v2501
        %2527 = vst.msk [vmem:[%s379 + $0x18] sm:$0xff] %vm2515, %v2502
        %2528 = vst.msk [vmem:[%s379 + $0x20] sm:$0xff] %vm2515, %v2503
        %2529 = vst.msk [vmem:[%s379 + $0x28] sm:$0xff] %vm2515, %v2504
        %2530 = vst.msk [vmem:[%s379 + $0x30] sm:$0xff] %vm2515, %v2505
        %2531 = vst.msk [vmem:[%s379 + $0x38] sm:$0xff] %vm2515, %v2506
        %s2532 = sand.u32 %s244, 1
        %s2533 = scalar_lea.sflag [#allocation4], %s2532
        %s2534 = sand.u32 %s244, 1
        %s2535 = smul.addr %s2534, 64
        %s2536 = scalar_lea.vmem [#allocation3], %s2535
        %s2537 = sand.u32 %s272, 1
        %s2538 = scalar_lea.sflag [#allocation6], %s2537
        %s2539 = sand.u32 %s272, 1
        %s2540 = smul.addr %s2539, 64
        %s2541 = scalar_lea.vmem [#allocation5], %s2540
        // Predicated region
        $region65: #{tpu_custom_call.1} parent=55 // pred_check
          %p2542 = pneg %p254
        $region66: #{tpu_custom_call.1} parent=55 // pred_check_branch
          %2544 = sbr.rel (%p2542) target = $region68
        $region67: #{tpu_custom_call.1} parent=55 // pred_region
          %s2545 = smul.u32 4, %s33
          %s2547 = ssub.s32 1024, 1024
          %2548 = vsyncadd %s2533, %s2547
          %s2549 = smul.addr %s2545, 2
          %s2550 = smul.addr %s32, 32
          %s2551 = sadd.s32 %s2549, %s2550
          %s2552 = smul.addr %s2551, 128
          %s2553 = scalar_lea.hbm %s9, %s2552
          %s2554 = sshll.u32 %s2536, 4
          %s2555 = int_to_ptr.vmem [resolvable:$true] %s2554
          %2560 = dma.vmem_to_hbm [thread:$0]  %s2555, 1024, %s2553, %s2533, 128, 128, 8
        $region68: #{tpu_custom_call.1} parent=55 // pred_fallthru
          _
        // Predicated region
        $region69: #{tpu_custom_call.1} parent=55 // pred_check
          %p2561 = pneg %p282
        $region70: #{tpu_custom_call.1} parent=55 // pred_check_branch
          %2563 = sbr.rel (%p2561) target = $region72
        $region71: #{tpu_custom_call.1} parent=55 // pred_region
          %s2564 = smul.u32 4, %s33
          %s2566 = ssub.s32 1024, 1024
          %2567 = vsyncadd %s2538, %s2566
          %s2568 = smul.addr %s2564, 2
          %s2569 = smul.addr %s32, 32
          %s2570 = sadd.s32 %s2568, %s2569
          %s2571 = smul.addr %s2570, 128
          %s2572 = scalar_lea.hbm %s10, %s2571
          %s2573 = sshll.u32 %s2541, 4
          %s2574 = int_to_ptr.vmem [resolvable:$true] %s2573
          %2579 = dma.vmem_to_hbm [thread:$0]  %s2574, 1024, %s2572, %s2538, 128, 128, 8
        $region72: #{tpu_custom_call.1} parent=55 // pred_fallthru
          _
      $region56: #{tpu_custom_call.1} parent=5 // pred_fallthru
        _
      %p2580 = scmp.le.s32.totalorder 2, %s23
      // Predicated region
      $region73: #{tpu_custom_call.1} parent=5 // pred_check
        %p2581 = pneg %p2580
      $region74: #{tpu_custom_call.1} parent=5 // pred_check_branch
        %2583 = sbr.rel (%p2581) target = $region76
      $region75: #{tpu_custom_call.1} parent=5 // pred_region
        %s2584 = ssub.s32 %s23, 2
        // Predicated region
        $region77: #{tpu_custom_call.1} parent=75 // pred_check
          %p2585 = pneg %p260
        $region78: #{tpu_custom_call.1} parent=75 // pred_check_branch
          %2587 = sbr.rel (%p2585) target = $region80
        $region79: #{tpu_custom_call.1} parent=75 // pred_region
          %s2588 = sand.u32 %s245, 1
          %s2589 = scalar_lea.sflag [#allocation4], %s2588
          %s2590 = sand.u32 %s245, 1
          %s2591 = smul.addr %s2590, 64
          %s2592 = scalar_lea.vmem [#allocation3], %s2591
          %2593 = dma.done %s2589, 1024
        $region80: #{tpu_custom_call.1} parent=75 // pred_fallthru
          _
        // Predicated region
        $region81: #{tpu_custom_call.1} parent=75 // pred_check
          %p2594 = pneg %p288
        $region82: #{tpu_custom_call.1} parent=75 // pred_check_branch
          %2596 = sbr.rel (%p2594) target = $region84
        $region83: #{tpu_custom_call.1} parent=75 // pred_region
          %s2597 = sand.u32 %s273, 1
          %s2598 = scalar_lea.sflag [#allocation6], %s2597
          %s2599 = sand.u32 %s273, 1
          %s2600 = smul.addr %s2599, 64
          %s2601 = scalar_lea.vmem [#allocation5], %s2600
          %2602 = dma.done %s2598, 1024
        $region84: #{tpu_custom_call.1} parent=75 // pred_fallthru
          _
      $region76: #{tpu_custom_call.1} parent=5 // pred_fallthru
        _
    $region6: #{tpu_custom_call.1} parent=1 // loop_footer
      %s27 = sadd.s32 1, %s23
    $region7: #{tpu_custom_call.1} parent=1 // loop_footer_branch
      %22 = sbr.rel target = $region3
    $region8: #{tpu_custom_call.1} parent=1 // loop_exit
      _
    %2603 = vsyncpa [#allocation4], 1
    %s2604 = scalar_lea.sflag [#allocation4], 1
    %2605 = vsyncpa %s2604, 1
    %2606 = vsyncpa [#allocation6], 1
    %s2607 = scalar_lea.sflag [#allocation6], 1
    %2608 = vsyncpa %s2607, 1

</llo_original>
